<compile_context>
chip_gen: v5e
topology: v5e:2x2
jax: 0.10.0
libtpu: 0.0.40
codegen_flags: <defaults>
</compile_context>

<pallas_src>
import math
from functools import partial

import jax
import jax.numpy as jnp
import numpy as np
from jax.experimental import pallas as pl
from jax.experimental.pallas import tpu as pltpu


# ----------------------------------------------------------------------------- host-side constant matrices
def _pool_matrix(n_in):
    """AvgPool2d(kernel=3, stride=2, padding=1) along one axis as a 0/1 matrix
    (count_include_pad=True -> the 1/9 factor is applied globally elsewhere)."""
    n_out = (n_in - 1) // 2 + 1
    m = np.zeros((n_out, n_in), np.float32)
    for i in range(n_out):
        for d in (-1, 0, 1):
            j = 2 * i + d
            if 0 <= j < n_in:
                m[i, j] = 1.0
    return m


def _composed_pool(n_in, k):
    """Compose k successive AvgPool2d(3,2,1) stages into one binary (n_out, n_in) matrix."""
    m = np.eye(n_in, dtype=np.float32)
    cur = n_in
    for _ in range(k):
        p = _pool_matrix(cur)
        m = p @ m
        cur = p.shape[0]
    return m, cur


def _split_upsample(n_up, s, shift):
    """Nearest-upsample-by-s selector for a patch shift, split by the original-resolution
    offset a = (u+shift)//s - u//s in {-1,0,1}.  Returns [S_{-1}, S_0, S_{+1}],
    each (n_up, n_up//s) with 0/1 entries."""
    n_orig = n_up // s
    mats = [np.zeros((n_up, n_orig), np.float32) for _ in range(3)]
    for u in range(n_up):
        y = u // s
        a = (u + shift) // s - y
        assert -1 <= a <= 1
        mats[a + 1][u, y] = 1.0
    return mats


def _build_corr_pool_mats(H, W, s, P, k):
    """Fold nearest-upsample(s) + patch shift + AvgPool2d(3,2,1)^k into
    AH (P*Hl, 3*H) and AW (3*W, P*Wl) so that for the 3x3 grid of original-resolution
    leaky correlations LgAll (3H, 3W):
        (AH @ LgAll @ AW)[pi*Hl:(pi+1)*Hl, pj*Wl:(pj+1)*Wl]
    equals the pooled correlation for patch displacement (pi, pj)."""
    pad = (P - 1) // 2
    Hup, Wup = H * s, W * s
    mh_bin, Hl = _composed_pool(Hup, k)         # (Hl, Hup)
    mw_bin, Wl = _composed_pool(Wup, k)         # (Wl, Wup)
    mh = mh_bin * (1.0 / 9.0) ** k              # fold the full AvgPool scale into H side
    mw = mw_bin
    ah = np.zeros((P * Hl, 3 * H), np.float32)
    for pi in range(P):
        sh = _split_upsample(Hup, s, pi - pad)
        for a in range(3):
            ah[pi * Hl:(pi + 1) * Hl, a * H:(a + 1) * H] = mh @ sh[a]
    aw = np.zeros((3 * W, P * Wl), np.float32)
    for pj in range(P):
        sw = _split_upsample(Wup, s, pj - pad)
        for b in range(3):
            aw[b * W:(b + 1) * W, pj * Wl:(pj + 1) * Wl] = (mw @ sw[b]).T
    return ah, aw, Hl, Wl


def _conv_masks(Hl, Wl):
    """(9, Hl*Wl) 0/1 masks for the 3x3 conv's zero padding, one per (ky, kx) tap,
    in flattened (y*Wl + x) lane order."""
    m = np.zeros((9, Hl * Wl), np.float32)
    for ky in range(3):
        for kx in range(3):
            vy = ((np.arange(Hl) + ky - 1) >= 0) & ((np.arange(Hl) + ky - 1) < Hl)
            vx = ((np.arange(Wl) + kx - 1) >= 0) & ((np.arange(Wl) + kx - 1) < Wl)
            m[ky * 3 + kx] = np.outer(vy, vx).astype(np.float32).reshape(-1)
    return m


# ----------------------------------------------------------------------------- kernel A
def _corr_pool_kernel(f1_ref, f2p_ref, ah_ref, aw_ref, out_ref, lg_ref,
                      *, H, W, neg_slope):
    """Original-resolution 3x3 correlation grid + LeakyReLU, then the folded
    (upsample + patch-shift + pooling) operator applied as two MXU matmuls
    producing all P*P pooled displacement maps at once."""
    f1 = f1_ref[0]                                              # (C, H, W)
    for a in range(3):
        for b in range(3):
            shifted = f2p_ref[0, :, pl.ds(a, H), pl.ds(b, W)]   # (C, H, W)
            corr = jnp.sum(f1 * shifted, axis=0)                # (H, W)
            lg_ref[pl.ds(a * H, H), pl.ds(b * W, W)] = jnp.where(
                corr > 0, corr, neg_slope * corr)               # LeakyReLU
    t = jnp.dot(ah_ref[...], lg_ref[...],
                preferred_element_type=jnp.float32)             # (P*Hl, 3*W)
    out_ref[0] = jnp.dot(t, aw_ref[...],
                         preferred_element_type=jnp.float32)    # (P*Hl, P*Wl)


# ----------------------------------------------------------------------------- kernel B
def _conv_lstm_kernel(pooled_ref, hpre_ref, cpre_ref, w_ref, b_ref, mask_ref,
                      hnext_ref, cnext_ref, x_ref, xcols_ref, *, PP, Wl, L):
    """Fused im2col 3x3 conv (one (4*PP, 2*PP*9) @ (2*PP*9, Hl*Wl) matmul) +
    ConvLSTM gate update, everything lane-dense over the flattened spatial axis."""
    C2 = 2 * PP
    # LSTM input = [pooled corr ; h_pre] along channels, spatial flattened to lanes.
    x_ref[pl.ds(0, PP), :] = pooled_ref[0]
    x_ref[pl.ds(PP, PP), :] = hpre_ref[0]
    x = x_ref[...]                                              # (2*PP, L)

    # im2col columns: a spatial shift (dy, dx) is a lane shift of dy*Wl + dx;
    # the conv's zero padding is applied via precomputed lane masks.
    xcols_ref[...] = jnp.zeros_like(xcols_ref)
    for ky in range(3):
        for kx in range(3):
            k = ky * 3 + kx
            delta = (ky - 1) * Wl + (kx - 1)
            mrow = mask_ref[pl.ds(k, 1), :]                     # (1, L)
            rows = pl.ds(k * C2, C2)
            if delta == 0:
                xcols_ref[rows, :] = x * mrow
            elif delta > 0:
                n = L - delta
                xcols_ref[rows, pl.ds(0, n)] = x[:, delta:] * mrow[:, :n]
            else:
                d = -delta
                n = L - d
                xcols_ref[rows, pl.ds(d, n)] = x[:, :n] * mrow[:, d:]

    # one matmul for all four gates over all output pixels
    gates = jnp.dot(w_ref[...], xcols_ref[...],
                    preferred_element_type=jnp.float32) + b_ref[...]   # (4*PP, L)

    i_g = 1.0 / (1.0 + jnp.exp(-gates[0 * PP:1 * PP]))
    f_g = 1.0 / (1.0 + jnp.exp(-gates[1 * PP:2 * PP]))
    o_g = 1.0 / (1.0 + jnp.exp(-gates[2 * PP:3 * PP]))
    g_g = jnp.tanh(gates[3 * PP:4 * PP])

    c_n = f_g * cpre_ref[0] + i_g * g_g
    cnext_ref[0] = c_n
    hnext_ref[0] = o_g * jnp.tanh(c_n)


# ----------------------------------------------------------------------------- wrapper (one pyramid level)
@partial(jax.jit, static_argnames=("scale", "corr_size", "neg_slope"))
def corr_lstm_level(feat1, feat2, h_pre, c_pre, w_conv, b_conv, *,
                    scale, corr_size, neg_slope=0.01):
    """One pyramid level of CorrLSTM_upsample_avg.forward.
    feat1 = x[i] (current frame), feat2 = x_pre[i] (previous frame), both NCHW.
    Returns (h_next, c_next)."""
    B, C, H, W = feat1.shape
    P = corr_size
    PP = P * P
    s = int(scale)
    pad = (P - 1) // 2
    assert pad <= s, "patch shift must stay within one original-resolution pixel"
    k = int(round(math.log2(s)))
    assert 2 ** k == s, "upsample scale must be a power of two"
    # TODO(synk): the reference module switches to AvgPool2d(3,2,padding=0) at the 7th
    # pooling stage (scale >= 128); that branch is unreachable here and not modeled.
    assert k < 7

    ah_np, aw_np, Hl, Wl = _build_corr_pool_mats(H, W, s, P, k)
    assert (Hl, Wl) == tuple(h_pre.shape[2:]), "pooling chain must return to base res"
    L = Hl * Wl
    Cin2 = 2 * PP

    ah = jnp.asarray(ah_np)                                     # (P*Hl, 3*H)
    aw = jnp.asarray(aw_np)                                     # (3*W, P*Wl)
    masks = jnp.asarray(_conv_masks(Hl, Wl))                    # (9, L)
    wmat = jnp.transpose(w_conv, (0, 2, 3, 1)).reshape(4 * PP, 9 * Cin2)
    bvec = b_conv.reshape(4 * PP, 1)

    # zero-pad previous-frame features by 1 (the +/-1 patch reach at original res)
    f2p = jnp.pad(feat2, ((0, 0), (0, 0), (1, 1), (1, 1)))

    cparams = pltpu.CompilerParams(
        dimension_semantics=("parallel",),          # batch elems independent -> megacore
        vmem_limit_bytes=32 * 1024 * 1024)

    # --- kernel A: correlation at original resolution + folded upsample/pool -------
    pooled_big = pl.pallas_call(
        partial(_corr_pool_kernel, H=H, W=W, neg_slope=neg_slope),
        out_shape=jax.ShapeDtypeStruct((B, P * Hl, P * Wl), jnp.float32),
        grid_spec=pltpu.PrefetchScalarGridSpec(
            num_scalar_prefetch=0,
            grid=(B,),
            in_specs=[
                pl.BlockSpec((1, C, H, W), lambda b: (b, 0, 0, 0)),
                pl.BlockSpec((1, C, H + 2, W + 2), lambda b: (b, 0, 0, 0)),
                pl.BlockSpec((P * Hl, 3 * H), lambda b: (0, 0)),
                pl.BlockSpec((3 * W, P * Wl), lambda b: (0, 0)),
            ],
            out_specs=pl.BlockSpec((1, P * Hl, P * Wl), lambda b: (b, 0, 0)),
            scratch_shapes=[pltpu.VMEM((3 * H, 3 * W), jnp.float32)],
        ),
        compiler_params=cparams,
    )(feat1, f2p, ah, aw)

    # (B, P*Hl, P*Wl) -> (B, PP, Hl*Wl): pure layout glue done once in HBM.
    pooled = pooled_big.reshape(B, P, Hl, P, Wl).transpose(0, 1, 3, 2, 4)
    pooled = pooled.reshape(B, PP, L)
    h_pre_f = h_pre.reshape(B, PP, L)
    c_pre_f = c_pre.reshape(B, PP, L)

    # --- kernel B: fused im2col ConvLSTM conv + gate update (lane-dense) -----------
    h_f, c_f = pl.pallas_call(
        partial(_conv_lstm_kernel, PP=PP, Wl=Wl, L=L),
        out_shape=(jax.ShapeDtypeStruct((B, PP, L), jnp.float32),
                   jax.ShapeDtypeStruct((B, PP, L), jnp.float32)),
        grid_spec=pltpu.PrefetchScalarGridSpec(
            num_scalar_prefetch=0,
            grid=(B,),
            in_specs=[
                pl.BlockSpec((1, PP, L), lambda b: (b, 0, 0)),
                pl.BlockSpec((1, PP, L), lambda b: (b, 0, 0)),
                pl.BlockSpec((1, PP, L), lambda b: (b, 0, 0)),
                pl.BlockSpec((4 * PP, 9 * Cin2), lambda b: (0, 0)),
                pl.BlockSpec((4 * PP, 1), lambda b: (0, 0)),
                pl.BlockSpec((9, L), lambda b: (0, 0)),
            ],
            out_specs=[
                pl.BlockSpec((1, PP, L), lambda b: (b, 0, 0)),
                pl.BlockSpec((1, PP, L), lambda b: (b, 0, 0)),
            ],
            scratch_shapes=[
                pltpu.VMEM((Cin2, L), jnp.float32),
                pltpu.VMEM((9 * Cin2, L), jnp.float32),
            ],
        ),
        compiler_params=cparams,
    )(pooled, h_pre_f, c_pre_f, wmat, bvec, masks)

    return h_f.reshape(B, PP, Hl, Wl), c_f.reshape(B, PP, Hl, Wl)


def corr_lstm_upsample_avg_forward(x_pre, x, motion_state, params, *, corr_size,
                                   upsample_param):
    """Full CorrLSTM_upsample_avg.forward over all pyramid levels."""
    state_next = []
    for i in range(len(x)):
        feat1 = x[i]            # zip(x, x_pre, ...) -> feat1 from x, feat2 from x_pre
        feat2 = x_pre[i]
        h_pre, c_pre = motion_state[i]
        w_conv, b_conv = params[i]
        scale = upsample_param * (2 ** i)
        h_n, c_n = corr_lstm_level(feat1, feat2, h_pre, c_pre, w_conv, b_conv,
                                   scale=scale, corr_size=corr_size)
        state_next.append((h_n, c_n))
    return state_next


# ----------------------------------------------------------------------------- params
def init_params(key, n_levels, corr_size):
    """Synthetic parameters matching the module's init_weights: xavier-uniform conv
    weights, zero bias with the forget-gate slice set to 1."""
    PP = corr_size * corr_size
    cin, cout = 2 * PP, 4 * PP
    params = []
    for _ in range(n_levels):
        key, wk = jax.random.split(key)
        fan_in, fan_out = cin * 9, cout * 9
        bound = math.sqrt(6.0 / (fan_in + fan_out))
        w = jax.random.uniform(wk, (cout, cin, 3, 3), jnp.float32, -bound, bound)
        b = jnp.zeros((cout,), jnp.float32).at[PP:2 * PP].set(1.0)
        params.append((w, b))
    return params


# ----------------------------------------------------------------------------- reference
def _ref_level(feat1, feat2, h_pre, c_pre, w, b, scale, P, neg_slope=0.01):
    """Pure-JAX reference mirroring the PyTorch forward."""
    s = int(scale)
    up1 = jnp.repeat(jnp.repeat(feat1, s, axis=2), s, axis=3)
    up2 = jnp.repeat(jnp.repeat(feat2, s, axis=2), s, axis=3)
    pad = (P - 1) // 2
    up2p = jnp.pad(up2, ((0, 0), (0, 0), (pad, pad), (pad, pad)))
    B, C, Hup, Wup = up1.shape
    corrs = []
    for pi in range(P):
        for pj in range(P):
            shifted = up2p[:, :, pi:pi + Hup, pj:pj + Wup]
            corrs.append(jnp.sum(up1 * shifted, axis=1))
    corr = jnp.stack(corrs, axis=1)
    corr = jnp.where(corr > 0, corr, neg_slope * corr)
    k = int(math.log2(Hup / feat1.shape[2]))
    for _ in range(k):
        corr = jax.lax.reduce_window(
            corr, 0.0, jax.lax.add, (1, 1, 3, 3), (1, 1, 2, 2),
            ((0, 0), (0, 0), (1, 1), (1, 1))) / 9.0
    lstm_in = jnp.concatenate([corr, h_pre], axis=1)
    conv = jax.lax.conv_general_dilated(
        lstm_in, w, (1, 1), ((1, 1), (1, 1)),
        dimension_numbers=('NCHW', 'OIHW', 'NCHW'))
    conv = conv + b[None, :, None, None]
    PP = P * P
    cc_i, cc_f = conv[:, :PP], conv[:, PP:2 * PP]
    cc_o, cc_g = conv[:, 2 * PP:3 * PP], conv[:, 3 * PP:]
    i_g = jax.nn.sigmoid(cc_i)
    f_g = jax.nn.sigmoid(cc_f)
    o_g = jax.nn.sigmoid(cc_o)
    g_g = jnp.tanh(cc_g)
    c_n = f_g * c_pre + i_g * g_g
    h_n = o_g * jnp.tanh(c_n)
    return h_n, c_n


# ----------------------------------------------------------------------------- main
if __name__ == "__main__":
    corr_size = 3
    upsample_param = 2
    in_channels = (4, 4)          # two pyramid levels (small synthetic config)
    spatials = (8, 4)
    B = 2
    PP = corr_size * corr_size

    params = init_params(jax.random.PRNGKey(0), len(in_channels), corr_size)

    key = jax.random.PRNGKey(0)
    x, x_pre, motion_state = [], [], []
    for lvl, (C, S) in enumerate(zip(in_channels, spatials)):
        key, k1, k2, k3, k4 = jax.random.split(key, 5)
        x.append(jax.random.normal(k1, (B, C, S, S), jnp.float32))
        x_pre.append(jax.random.normal(k2, (B, C, S, S), jnp.float32))
        h0 = jax.random.normal(k3, (B, PP, S, S), jnp.float32)
        c0 = jax.random.normal(k4, (B, PP, S, S), jnp.float32)
        motion_state.append((h0, c0))

    # Pallas kernels
    state_next = corr_lstm_upsample_avg_forward(
        x_pre, x, motion_state, params,
        corr_size=corr_size, upsample_param=upsample_param)
    state_next = jax.block_until_ready(state_next)

    # Pure-JAX reference check
    ok = True
    for lvl in range(len(in_channels)):
        w, b = params[lvl]
        h_ref, c_ref = _ref_level(x[lvl], x_pre[lvl], *motion_state[lvl], w, b,
                                  scale=upsample_param * (2 ** lvl), P=corr_size)
        h_k, c_k = state_next[lvl]
        ok &= bool(jnp.max(jnp.abs(h_k - h_ref)) < 5e-2)
        ok &= bool(jnp.max(jnp.abs(c_k - c_ref)) < 5e-2)
    assert ok, "Pallas output mismatch vs pure-JAX reference"

    print("KERNEL_OK")
</pallas_src>

<mosaic_0001>
module attributes {stable_mosaic.version = 11 : i64} {
  func.func @_corr_pool_kernel(%arg0: i32, %arg1: memref<1x4x8x8xf32, #tpu.memory_space<vmem>>, %arg2: memref<1x4x10x10xf32, #tpu.memory_space<vmem>>, %arg3: memref<24x24xf32, #tpu.memory_space<vmem>>, %arg4: memref<24x24xf32, #tpu.memory_space<vmem>>, %arg5: memref<1x24x24xf32, #tpu.memory_space<vmem>>, %arg6: memref<24x24xf32, #tpu.memory_space<vmem>>) attributes {dimension_semantics = [#tpu.dimension_semantics<parallel>], iteration_bounds = array<i64: 2>, scalar_prefetch = 0 : i64, scratch_operands = 1 : i64, tpu.core_type = #tpu.core_type<tc>, window_params = [{transform_indices = @transform_0, window_bounds = array<i64: 1, 4, 8, 8>}, {transform_indices = @transform_1, window_bounds = array<i64: 1, 4, 10, 10>}, {pipeline_mode = #tpu.pipeline_mode<synchronous>, transform_indices = @transform_2, window_bounds = array<i64: 24, 24>}, {pipeline_mode = #tpu.pipeline_mode<synchronous>, transform_indices = @transform_3, window_bounds = array<i64: 24, 24>}, {transform_indices = @transform_4, window_bounds = array<i64: 1, 24, 24>}]} {
    %c0 = arith.constant 0 : index
    %c0_0 = arith.constant 0 : index
    %c0_1 = arith.constant 0 : index
    %c0_2 = arith.constant 0 : index
    %0 = vector.load %arg1[%c0, %c0_0, %c0_1, %c0_2] : memref<1x4x8x8xf32, #tpu.memory_space<vmem>>, vector<1x4x8x8xf32>
    %1 = vector.shape_cast %0 : vector<1x4x8x8xf32> to vector<4x8x8xf32>
    %c0_3 = arith.constant 0 : index
    %c0_4 = arith.constant 0 : index
    %c0_5 = arith.constant 0 : index
    %c0_6 = arith.constant 0 : index
    %2 = vector.load %arg2[%c0_3, %c0_4, %c0_5, %c0_6] : memref<1x4x10x10xf32, #tpu.memory_space<vmem>>, vector<1x4x8x8xf32>
    %3 = vector.shape_cast %2 : vector<1x4x8x8xf32> to vector<4x8x8xf32>
    %4 = arith.mulf %1, %3 : vector<4x8x8xf32>
    %cst = arith.constant dense<0.000000e+00> : vector<8x8xf32>
    %5 = vector.multi_reduction <add>, %4, %cst [0] : vector<4x8x8xf32> to vector<8x8xf32>
    %cst_7 = arith.constant 0.000000e+00 : f32
    %6 = vector.broadcast %cst_7 : f32 to vector<8x8xf32>
    %7 = arith.cmpf ogt, %5, %6 : vector<8x8xf32>
    %cst_8 = arith.constant 0.00999999977 : f32
    %8 = vector.broadcast %cst_8 : f32 to vector<8x8xf32>
    %9 = arith.mulf %8, %5 : vector<8x8xf32>
    %10 = arith.select %7, %5, %9 : vector<8x8xi1>, vector<8x8xf32>
    %c0_9 = arith.constant 0 : index
    %c0_10 = arith.constant 0 : index
    %11 = vector.load %arg6[%c0_9, %c0_10] : memref<24x24xf32, #tpu.memory_space<vmem>>, vector<8x8xf32>
    tpu.vector_store %arg6[%c0_9, %c0_10], %10 {strides = array<i32>} : memref<24x24xf32, #tpu.memory_space<vmem>>, vector<8x8xf32>,
    %c0_11 = arith.constant 0 : index
    %c0_12 = arith.constant 0 : index
    %c0_13 = arith.constant 0 : index
    %c1 = arith.constant 1 : index
    %12 = vector.load %arg2[%c0_11, %c0_12, %c0_13, %c1] : memref<1x4x10x10xf32, #tpu.memory_space<vmem>>, vector<1x4x8x8xf32>
    %13 = vector.shape_cast %12 : vector<1x4x8x8xf32> to vector<4x8x8xf32>
    %14 = arith.mulf %1, %13 : vector<4x8x8xf32>
    %cst_14 = arith.constant dense<0.000000e+00> : vector<8x8xf32>
    %15 = vector.multi_reduction <add>, %14, %cst_14 [0] : vector<4x8x8xf32> to vector<8x8xf32>
    %cst_15 = arith.constant 0.000000e+00 : f32
    %16 = vector.broadcast %cst_15 : f32 to vector<8x8xf32>
    %17 = arith.cmpf ogt, %15, %16 : vector<8x8xf32>
    %cst_16 = arith.constant 0.00999999977 : f32
    %18 = vector.broadcast %cst_16 : f32 to vector<8x8xf32>
    %19 = arith.mulf %18, %15 : vector<8x8xf32>
    %20 = arith.select %17, %15, %19 : vector<8x8xi1>, vector<8x8xf32>
    %c0_17 = arith.constant 0 : index
    %c8 = arith.constant 8 : index
    %21 = vector.load %arg6[%c0_17, %c8] : memref<24x24xf32, #tpu.memory_space<vmem>>, vector<8x8xf32>
    tpu.vector_store %arg6[%c0_17, %c8], %20 {strides = array<i32>} : memref<24x24xf32, #tpu.memory_space<vmem>>, vector<8x8xf32>,
    %c0_18 = arith.constant 0 : index
    %c0_19 = arith.constant 0 : index
    %c0_20 = arith.constant 0 : index
    %c2 = arith.constant 2 : index
    %22 = vector.load %arg2[%c0_18, %c0_19, %c0_20, %c2] : memref<1x4x10x10xf32, #tpu.memory_space<vmem>>, vector<1x4x8x8xf32>
    %23 = vector.shape_cast %22 : vector<1x4x8x8xf32> to vector<4x8x8xf32>
    %24 = arith.mulf %1, %23 : vector<4x8x8xf32>
    %cst_21 = arith.constant dense<0.000000e+00> : vector<8x8xf32>
    %25 = vector.multi_reduction <add>, %24, %cst_21 [0] : vector<4x8x8xf32> to vector<8x8xf32>
    %cst_22 = arith.constant 0.000000e+00 : f32
    %26 = vector.broadcast %cst_22 : f32 to vector<8x8xf32>
    %27 = arith.cmpf ogt, %25, %26 : vector<8x8xf32>
    %cst_23 = arith.constant 0.00999999977 : f32
    %28 = vector.broadcast %cst_23 : f32 to vector<8x8xf32>
    %29 = arith.mulf %28, %25 : vector<8x8xf32>
    %30 = arith.select %27, %25, %29 : vector<8x8xi1>, vector<8x8xf32>
    %c0_24 = arith.constant 0 : index
    %c16 = arith.constant 16 : index
    %31 = vector.load %arg6[%c0_24, %c16] : memref<24x24xf32, #tpu.memory_space<vmem>>, vector<8x8xf32>
    tpu.vector_store %arg6[%c0_24, %c16], %30 {strides = array<i32>} : memref<24x24xf32, #tpu.memory_space<vmem>>, vector<8x8xf32>,
    %c0_25 = arith.constant 0 : index
    %c0_26 = arith.constant 0 : index
    %c1_27 = arith.constant 1 : index
    %c0_28 = arith.constant 0 : index
    %32 = vector.load %arg2[%c0_25, %c0_26, %c1_27, %c0_28] : memref<1x4x10x10xf32, #tpu.memory_space<vmem>>, vector<1x4x8x8xf32>
    %33 = vector.shape_cast %32 : vector<1x4x8x8xf32> to vector<4x8x8xf32>
    %34 = arith.mulf %1, %33 : vector<4x8x8xf32>
    %cst_29 = arith.constant dense<0.000000e+00> : vector<8x8xf32>
    %35 = vector.multi_reduction <add>, %34, %cst_29 [0] : vector<4x8x8xf32> to vector<8x8xf32>
    %cst_30 = arith.constant 0.000000e+00 : f32
    %36 = vector.broadcast %cst_30 : f32 to vector<8x8xf32>
    %37 = arith.cmpf ogt, %35, %36 : vector<8x8xf32>
    %cst_31 = arith.constant 0.00999999977 : f32
    %38 = vector.broadcast %cst_31 : f32 to vector<8x8xf32>
    %39 = arith.mulf %38, %35 : vector<8x8xf32>
    %40 = arith.select %37, %35, %39 : vector<8x8xi1>, vector<8x8xf32>
    %c8_32 = arith.constant 8 : index
    %c0_33 = arith.constant 0 : index
    %41 = vector.load %arg6[%c8_32, %c0_33] : memref<24x24xf32, #tpu.memory_space<vmem>>, vector<8x8xf32>
    tpu.vector_store %arg6[%c8_32, %c0_33], %40 {strides = array<i32>} : memref<24x24xf32, #tpu.memory_space<vmem>>, vector<8x8xf32>,
    %c0_34 = arith.constant 0 : index
    %c0_35 = arith.constant 0 : index
    %c1_36 = arith.constant 1 : index
    %c1_37 = arith.constant 1 : index
    %42 = vector.load %arg2[%c0_34, %c0_35, %c1_36, %c1_37] : memref<1x4x10x10xf32, #tpu.memory_space<vmem>>, vector<1x4x8x8xf32>
    %43 = vector.shape_cast %42 : vector<1x4x8x8xf32> to vector<4x8x8xf32>
    %44 = arith.mulf %1, %43 : vector<4x8x8xf32>
    %cst_38 = arith.constant dense<0.000000e+00> : vector<8x8xf32>
    %45 = vector.multi_reduction <add>, %44, %cst_38 [0] : vector<4x8x8xf32> to vector<8x8xf32>
    %cst_39 = arith.constant 0.000000e+00 : f32
    %46 = vector.broadcast %cst_39 : f32 to vector<8x8xf32>
    %47 = arith.cmpf ogt, %45, %46 : vector<8x8xf32>
    %cst_40 = arith.constant 0.00999999977 : f32
    %48 = vector.broadcast %cst_40 : f32 to vector<8x8xf32>
    %49 = arith.mulf %48, %45 : vector<8x8xf32>
    %50 = arith.select %47, %45, %49 : vector<8x8xi1>, vector<8x8xf32>
    %c8_41 = arith.constant 8 : index
    %c8_42 = arith.constant 8 : index
    %51 = vector.load %arg6[%c8_41, %c8_42] : memref<24x24xf32, #tpu.memory_space<vmem>>, vector<8x8xf32>
    tpu.vector_store %arg6[%c8_41, %c8_42], %50 {strides = array<i32>} : memref<24x24xf32, #tpu.memory_space<vmem>>, vector<8x8xf32>,
    %c0_43 = arith.constant 0 : index
    %c0_44 = arith.constant 0 : index
    %c1_45 = arith.constant 1 : index
    %c2_46 = arith.constant 2 : index
    %52 = vector.load %arg2[%c0_43, %c0_44, %c1_45, %c2_46] : memref<1x4x10x10xf32, #tpu.memory_space<vmem>>, vector<1x4x8x8xf32>
    %53 = vector.shape_cast %52 : vector<1x4x8x8xf32> to vector<4x8x8xf32>
    %54 = arith.mulf %1, %53 : vector<4x8x8xf32>
    %cst_47 = arith.constant dense<0.000000e+00> : vector<8x8xf32>
    %55 = vector.multi_reduction <add>, %54, %cst_47 [0] : vector<4x8x8xf32> to vector<8x8xf32>
    %cst_48 = arith.constant 0.000000e+00 : f32
    %56 = vector.broadcast %cst_48 : f32 to vector<8x8xf32>
    %57 = arith.cmpf ogt, %55, %56 : vector<8x8xf32>
    %cst_49 = arith.constant 0.00999999977 : f32
    %58 = vector.broadcast %cst_49 : f32 to vector<8x8xf32>
    %59 = arith.mulf %58, %55 : vector<8x8xf32>
    %60 = arith.select %57, %55, %59 : vector<8x8xi1>, vector<8x8xf32>
    %c8_50 = arith.constant 8 : index
    %c16_51 = arith.constant 16 : index
    %61 = vector.load %arg6[%c8_50, %c16_51] : memref<24x24xf32, #tpu.memory_space<vmem>>, vector<8x8xf32>
    tpu.vector_store %arg6[%c8_50, %c16_51], %60 {strides = array<i32>} : memref<24x24xf32, #tpu.memory_space<vmem>>, vector<8x8xf32>,
    %c0_52 = arith.constant 0 : index
    %c0_53 = arith.constant 0 : index
    %c2_54 = arith.constant 2 : index
    %c0_55 = arith.constant 0 : index
    %62 = vector.load %arg2[%c0_52, %c0_53, %c2_54, %c0_55] : memref<1x4x10x10xf32, #tpu.memory_space<vmem>>, vector<1x4x8x8xf32>
    %63 = vector.shape_cast %62 : vector<1x4x8x8xf32> to vector<4x8x8xf32>
    %64 = arith.mulf %1, %63 : vector<4x8x8xf32>
    %cst_56 = arith.constant dense<0.000000e+00> : vector<8x8xf32>
    %65 = vector.multi_reduction <add>, %64, %cst_56 [0] : vector<4x8x8xf32> to vector<8x8xf32>
    %cst_57 = arith.constant 0.000000e+00 : f32
    %66 = vector.broadcast %cst_57 : f32 to vector<8x8xf32>
    %67 = arith.cmpf ogt, %65, %66 : vector<8x8xf32>
    %cst_58 = arith.constant 0.00999999977 : f32
    %68 = vector.broadcast %cst_58 : f32 to vector<8x8xf32>
    %69 = arith.mulf %68, %65 : vector<8x8xf32>
    %70 = arith.select %67, %65, %69 : vector<8x8xi1>, vector<8x8xf32>
    %c16_59 = arith.constant 16 : index
    %c0_60 = arith.constant 0 : index
    %71 = vector.load %arg6[%c16_59, %c0_60] : memref<24x24xf32, #tpu.memory_space<vmem>>, vector<8x8xf32>
    tpu.vector_store %arg6[%c16_59, %c0_60], %70 {strides = array<i32>} : memref<24x24xf32, #tpu.memory_space<vmem>>, vector<8x8xf32>,
    %c0_61 = arith.constant 0 : index
    %c0_62 = arith.constant 0 : index
    %c2_63 = arith.constant 2 : index
    %c1_64 = arith.constant 1 : index
    %72 = vector.load %arg2[%c0_61, %c0_62, %c2_63, %c1_64] : memref<1x4x10x10xf32, #tpu.memory_space<vmem>>, vector<1x4x8x8xf32>
    %73 = vector.shape_cast %72 : vector<1x4x8x8xf32> to vector<4x8x8xf32>
    %74 = arith.mulf %1, %73 : vector<4x8x8xf32>
    %cst_65 = arith.constant dense<0.000000e+00> : vector<8x8xf32>
    %75 = vector.multi_reduction <add>, %74, %cst_65 [0] : vector<4x8x8xf32> to vector<8x8xf32>
    %cst_66 = arith.constant 0.000000e+00 : f32
    %76 = vector.broadcast %cst_66 : f32 to vector<8x8xf32>
    %77 = arith.cmpf ogt, %75, %76 : vector<8x8xf32>
    %cst_67 = arith.constant 0.00999999977 : f32
    %78 = vector.broadcast %cst_67 : f32 to vector<8x8xf32>
    %79 = arith.mulf %78, %75 : vector<8x8xf32>
    %80 = arith.select %77, %75, %79 : vector<8x8xi1>, vector<8x8xf32>
    %c16_68 = arith.constant 16 : index
    %c8_69 = arith.constant 8 : index
    %81 = vector.load %arg6[%c16_68, %c8_69] : memref<24x24xf32, #tpu.memory_space<vmem>>, vector<8x8xf32>
    tpu.vector_store %arg6[%c16_68, %c8_69], %80 {strides = array<i32>} : memref<24x24xf32, #tpu.memory_space<vmem>>, vector<8x8xf32>,
    %c0_70 = arith.constant 0 : index
    %c0_71 = arith.constant 0 : index
    %c2_72 = arith.constant 2 : index
    %c2_73 = arith.constant 2 : index
    %82 = vector.load %arg2[%c0_70, %c0_71, %c2_72, %c2_73] : memref<1x4x10x10xf32, #tpu.memory_space<vmem>>, vector<1x4x8x8xf32>
    %83 = vector.shape_cast %82 : vector<1x4x8x8xf32> to vector<4x8x8xf32>
    %84 = arith.mulf %1, %83 : vector<4x8x8xf32>
    %cst_74 = arith.constant dense<0.000000e+00> : vector<8x8xf32>
    %85 = vector.multi_reduction <add>, %84, %cst_74 [0] : vector<4x8x8xf32> to vector<8x8xf32>
    %cst_75 = arith.constant 0.000000e+00 : f32
    %86 = vector.broadcast %cst_75 : f32 to vector<8x8xf32>
    %87 = arith.cmpf ogt, %85, %86 : vector<8x8xf32>
    %cst_76 = arith.constant 0.00999999977 : f32
    %88 = vector.broadcast %cst_76 : f32 to vector<8x8xf32>
    %89 = arith.mulf %88, %85 : vector<8x8xf32>
    %90 = arith.select %87, %85, %89 : vector<8x8xi1>, vector<8x8xf32>
    %c16_77 = arith.constant 16 : index
    %c16_78 = arith.constant 16 : index
    %91 = vector.load %arg6[%c16_77, %c16_78] : memref<24x24xf32, #tpu.memory_space<vmem>>, vector<8x8xf32>
    tpu.vector_store %arg6[%c16_77, %c16_78], %90 {strides = array<i32>} : memref<24x24xf32, #tpu.memory_space<vmem>>, vector<8x8xf32>,
    %c0_79 = arith.constant 0 : index
    %c0_80 = arith.constant 0 : index
    %92 = vector.load %arg3[%c0_79, %c0_80] : memref<24x24xf32, #tpu.memory_space<vmem>>, vector<24x24xf32>
    %c0_81 = arith.constant 0 : index
    %c0_82 = arith.constant 0 : index
    %93 = vector.load %arg6[%c0_81, %c0_82] : memref<24x24xf32, #tpu.memory_space<vmem>>, vector<24x24xf32>
    %cst_83 = arith.constant dense<0.000000e+00> : vector<24x24xf32>
    %94 = tpu.matmul %92, %93, %cst_83 {dimension_numbers = #tpu.dot_dimension_numbers<[1], [0], [0], [1], [0, 0, 1, 1], [], []>} : vector<24x24xf32>, vector<24x24xf32>, vector<24x24xf32> -> vector<24x24xf32>
    %c0_84 = arith.constant 0 : index
    %c0_85 = arith.constant 0 : index
    %95 = vector.load %arg4[%c0_84, %c0_85] : memref<24x24xf32, #tpu.memory_space<vmem>>, vector<24x24xf32>
    %cst_86 = arith.constant dense<0.000000e+00> : vector<24x24xf32>
    %96 = tpu.matmul %94, %95, %cst_86 {dimension_numbers = #tpu.dot_dimension_numbers<[1], [0], [0], [1], [0, 0, 1, 1], [], []>} : vector<24x24xf32>, vector<24x24xf32>, vector<24x24xf32> -> vector<24x24xf32>
    %c0_87 = arith.constant 0 : index
    %c0_88 = arith.constant 0 : index
    %c0_89 = arith.constant 0 : index
    %97 = vector.load %arg5[%c0_87, %c0_88, %c0_89] : memref<1x24x24xf32, #tpu.memory_space<vmem>>, vector<1x24x24xf32>
    %98 = vector.shape_cast %97 : vector<1x24x24xf32> to vector<24x24xf32>
    %99 = vector.shape_cast %96 : vector<24x24xf32> to vector<1x24x24xf32>
    tpu.vector_store %arg5[%c0_87, %c0_88, %c0_89], %99 {strides = array<i32>} : memref<1x24x24xf32, #tpu.memory_space<vmem>>, vector<1x24x24xf32>,
    return
  }
  func.func @transform_0(%arg0: i32) -> (i32, i32, i32, i32) {
    %c0_i32 = arith.constant 0 : i32
    %c0_i32_0 = arith.constant 0 : i32
    %c0_i32_1 = arith.constant 0 : i32
    %c0_i32_2 = arith.constant 0 : i32
    return %arg0, %c0_i32, %c0_i32_0, %c0_i32_1 : i32, i32, i32, i32
  }
  func.func @transform_1(%arg0: i32) -> (i32, i32, i32, i32) {
    %c0_i32 = arith.constant 0 : i32
    %c0_i32_0 = arith.constant 0 : i32
    %c0_i32_1 = arith.constant 0 : i32
    %c0_i32_2 = arith.constant 0 : i32
    return %arg0, %c0_i32, %c0_i32_0, %c0_i32_1 : i32, i32, i32, i32
  }
  func.func @transform_2(%arg0: i32) -> (i32, i32) {
    %c0_i32 = arith.constant 0 : i32
    %c0_i32_0 = arith.constant 0 : i32
    %c0_i32_1 = arith.constant 0 : i32
    return %c0_i32, %c0_i32_0 : i32, i32
  }
  func.func @transform_3(%arg0: i32) -> (i32, i32) {
    %c0_i32 = arith.constant 0 : i32
    %c0_i32_0 = arith.constant 0 : i32
    %c0_i32_1 = arith.constant 0 : i32
    return %c0_i32, %c0_i32_0 : i32, i32
  }
  func.func @transform_4(%arg0: i32) -> (i32, i32, i32) {
    %c0_i32 = arith.constant 0 : i32
    %c0_i32_0 = arith.constant 0 : i32
    %c0_i32_1 = arith.constant 0 : i32
    return %arg0, %c0_i32, %c0_i32_0 : i32, i32, i32
  }
}

module attributes {stable_mosaic.version = 11 : i64} {
  func.func @_conv_lstm_kernel(%arg0: i32, %arg1: memref<1x9x64xf32, #tpu.memory_space<vmem>>, %arg2: memref<1x9x64xf32, #tpu.memory_space<vmem>>, %arg3: memref<1x9x64xf32, #tpu.memory_space<vmem>>, %arg4: memref<36x162xf32, #tpu.memory_space<vmem>>, %arg5: memref<36x1xf32, #tpu.memory_space<vmem>>, %arg6: memref<9x64xf32, #tpu.memory_space<vmem>>, %arg7: memref<1x9x64xf32, #tpu.memory_space<vmem>>, %arg8: memref<1x9x64xf32, #tpu.memory_space<vmem>>, %arg9: memref<18x64xf32, #tpu.memory_space<vmem>>, %arg10: memref<162x64xf32, #tpu.memory_space<vmem>>) attributes {dimension_semantics = [#tpu.dimension_semantics<parallel>], iteration_bounds = array<i64: 2>, scalar_prefetch = 0 : i64, scratch_operands = 2 : i64, tpu.core_type = #tpu.core_type<tc>, window_params = [{transform_indices = @transform_0, window_bounds = array<i64: 1, 9, 64>}, {transform_indices = @transform_1, window_bounds = array<i64: 1, 9, 64>}, {transform_indices = @transform_2, window_bounds = array<i64: 1, 9, 64>}, {pipeline_mode = #tpu.pipeline_mode<synchronous>, transform_indices = @transform_3, window_bounds = array<i64: 36, 162>}, {pipeline_mode = #tpu.pipeline_mode<synchronous>, transform_indices = @transform_4, window_bounds = array<i64: 36, 1>}, {pipeline_mode = #tpu.pipeline_mode<synchronous>, transform_indices = @transform_5, window_bounds = array<i64: 9, 64>}, {transform_indices = @transform_6, window_bounds = array<i64: 1, 9, 64>}, {transform_indices = @transform_7, window_bounds = array<i64: 1, 9, 64>}]} {
    %c0 = arith.constant 0 : index
    %c0_0 = arith.constant 0 : index
    %c0_1 = arith.constant 0 : index
    %0 = vector.load %arg1[%c0, %c0_0, %c0_1] : memref<1x9x64xf32, #tpu.memory_space<vmem>>, vector<1x9x64xf32>
    %1 = vector.shape_cast %0 : vector<1x9x64xf32> to vector<9x64xf32>
    %c0_2 = arith.constant 0 : index
    %c0_3 = arith.constant 0 : index
    %2 = vector.load %arg9[%c0_2, %c0_3] : memref<18x64xf32, #tpu.memory_space<vmem>>, vector<9x64xf32>
    tpu.vector_store %arg9[%c0_2, %c0_3], %1 {strides = array<i32>} : memref<18x64xf32, #tpu.memory_space<vmem>>, vector<9x64xf32>,
    %c0_4 = arith.constant 0 : index
    %c0_5 = arith.constant 0 : index
    %c0_6 = arith.constant 0 : index
    %3 = vector.load %arg2[%c0_4, %c0_5, %c0_6] : memref<1x9x64xf32, #tpu.memory_space<vmem>>, vector<1x9x64xf32>
    %4 = vector.shape_cast %3 : vector<1x9x64xf32> to vector<9x64xf32>
    %c9 = arith.constant 9 : index
    %c0_7 = arith.constant 0 : index
    %5 = vector.load %arg9[%c9, %c0_7] : memref<18x64xf32, #tpu.memory_space<vmem>>, vector<9x64xf32>
    tpu.vector_store %arg9[%c9, %c0_7], %4 {strides = array<i32>} : memref<18x64xf32, #tpu.memory_space<vmem>>, vector<9x64xf32>,
    %c0_8 = arith.constant 0 : index
    %c0_9 = arith.constant 0 : index
    %6 = vector.load %arg9[%c0_8, %c0_9] : memref<18x64xf32, #tpu.memory_space<vmem>>, vector<18x64xf32>
    %cst = arith.constant 0.000000e+00 : f32
    %7 = vector.broadcast %cst : f32 to vector<162x64xf32>
    %c0_10 = arith.constant 0 : index
    %c0_11 = arith.constant 0 : index
    %8 = vector.load %arg10[%c0_10, %c0_11] : memref<162x64xf32, #tpu.memory_space<vmem>>, vector<162x64xf32>
    tpu.vector_store %arg10[%c0_10, %c0_11], %7 {strides = array<i32>} : memref<162x64xf32, #tpu.memory_space<vmem>>, vector<162x64xf32>,
    %c0_12 = arith.constant 0 : index
    %c0_13 = arith.constant 0 : index
    %9 = vector.load %arg6[%c0_12, %c0_13] : memref<9x64xf32, #tpu.memory_space<vmem>>, vector<1x64xf32>
    %10 = vector.extract_strided_slice %6 {offsets = [0, 0], sizes = [18, 55], strides = [1, 1]} : vector<18x64xf32> to vector<18x55xf32>
    %11 = vector.extract_strided_slice %9 {offsets = [0, 9], sizes = [1, 55], strides = [1, 1]} : vector<1x64xf32> to vector<1x55xf32>
    %12 = vector.broadcast %11 : vector<1x55xf32> to vector<18x55xf32>
    %13 = arith.mulf %10, %12 : vector<18x55xf32>
    %c0_14 = arith.constant 0 : index
    %c9_15 = arith.constant 9 : index
    %14 = vector.load %arg10[%c0_14, %c9_15] : memref<162x64xf32, #tpu.memory_space<vmem>>, vector<18x55xf32>
    tpu.vector_store %arg10[%c0_14, %c9_15], %13 {strides = array<i32>} : memref<162x64xf32, #tpu.memory_space<vmem>>, vector<18x55xf32>,
    %c1 = arith.constant 1 : index
    %c0_16 = arith.constant 0 : index
    %15 = vector.load %arg6[%c1, %c0_16] : memref<9x64xf32, #tpu.memory_space<vmem>>, vector<1x64xf32>
    %16 = vector.extract_strided_slice %6 {offsets = [0, 0], sizes = [18, 56], strides = [1, 1]} : vector<18x64xf32> to vector<18x56xf32>
    %17 = vector.extract_strided_slice %15 {offsets = [0, 8], sizes = [1, 56], strides = [1, 1]} : vector<1x64xf32> to vector<1x56xf32>
    %18 = vector.broadcast %17 : vector<1x56xf32> to vector<18x56xf32>
    %19 = arith.mulf %16, %18 : vector<18x56xf32>
    %c18 = arith.constant 18 : index
    %c8 = arith.constant 8 : index
    %20 = vector.load %arg10[%c18, %c8] : memref<162x64xf32, #tpu.memory_space<vmem>>, vector<18x56xf32>
    tpu.vector_store %arg10[%c18, %c8], %19 {strides = array<i32>} : memref<162x64xf32, #tpu.memory_space<vmem>>, vector<18x56xf32>,
    %c2 = arith.constant 2 : index
    %c0_17 = arith.constant 0 : index
    %21 = vector.load %arg6[%c2, %c0_17] : memref<9x64xf32, #tpu.memory_space<vmem>>, vector<1x64xf32>
    %22 = vector.extract_strided_slice %6 {offsets = [0, 0], sizes = [18, 57], strides = [1, 1]} : vector<18x64xf32> to vector<18x57xf32>
    %23 = vector.extract_strided_slice %21 {offsets = [0, 7], sizes = [1, 57], strides = [1, 1]} : vector<1x64xf32> to vector<1x57xf32>
    %24 = vector.broadcast %23 : vector<1x57xf32> to vector<18x57xf32>
    %25 = arith.mulf %22, %24 : vector<18x57xf32>
    %c36 = arith.constant 36 : index
    %c7 = arith.constant 7 : index
    %26 = vector.load %arg10[%c36, %c7] : memref<162x64xf32, #tpu.memory_space<vmem>>, vector<18x57xf32>
    tpu.vector_store %arg10[%c36, %c7], %25 {strides = array<i32>} : memref<162x64xf32, #tpu.memory_space<vmem>>, vector<18x57xf32>,
    %c3 = arith.constant 3 : index
    %c0_18 = arith.constant 0 : index
    %27 = vector.load %arg6[%c3, %c0_18] : memref<9x64xf32, #tpu.memory_space<vmem>>, vector<1x64xf32>
    %28 = vector.extract_strided_slice %6 {offsets = [0, 0], sizes = [18, 63], strides = [1, 1]} : vector<18x64xf32> to vector<18x63xf32>
    %29 = vector.extract_strided_slice %27 {offsets = [0, 1], sizes = [1, 63], strides = [1, 1]} : vector<1x64xf32> to vector<1x63xf32>
    %30 = vector.broadcast %29 : vector<1x63xf32> to vector<18x63xf32>
    %31 = arith.mulf %28, %30 : vector<18x63xf32>
    %c54 = arith.constant 54 : index
    %c1_19 = arith.constant 1 : index
    %32 = vector.load %arg10[%c54, %c1_19] : memref<162x64xf32, #tpu.memory_space<vmem>>, vector<18x63xf32>
    tpu.vector_store %arg10[%c54, %c1_19], %31 {strides = array<i32>} : memref<162x64xf32, #tpu.memory_space<vmem>>, vector<18x63xf32>,
    %c4 = arith.constant 4 : index
    %c0_20 = arith.constant 0 : index
    %33 = vector.load %arg6[%c4, %c0_20] : memref<9x64xf32, #tpu.memory_space<vmem>>, vector<1x64xf32>
    %34 = vector.broadcast %33 : vector<1x64xf32> to vector<18x64xf32>
    %35 = arith.mulf %6, %34 : vector<18x64xf32>
    %c72 = arith.constant 72 : index
    %c0_21 = arith.constant 0 : index
    %36 = vector.load %arg10[%c72, %c0_21] : memref<162x64xf32, #tpu.memory_space<vmem>>, vector<18x64xf32>
    tpu.vector_store %arg10[%c72, %c0_21], %35 {strides = array<i32>} : memref<162x64xf32, #tpu.memory_space<vmem>>, vector<18x64xf32>,
    %c5 = arith.constant 5 : index
    %c0_22 = arith.constant 0 : index
    %37 = vector.load %arg6[%c5, %c0_22] : memref<9x64xf32, #tpu.memory_space<vmem>>, vector<1x64xf32>
    %38 = vector.extract_strided_slice %6 {offsets = [0, 1], sizes = [18, 63], strides = [1, 1]} : vector<18x64xf32> to vector<18x63xf32>
    %39 = vector.extract_strided_slice %37 {offsets = [0, 0], sizes = [1, 63], strides = [1, 1]} : vector<1x64xf32> to vector<1x63xf32>
    %40 = vector.broadcast %39 : vector<1x63xf32> to vector<18x63xf32>
    %41 = arith.mulf %38, %40 : vector<18x63xf32>
    %c90 = arith.constant 90 : index
    %c0_23 = arith.constant 0 : index
    %42 = vector.load %arg10[%c90, %c0_23] : memref<162x64xf32, #tpu.memory_space<vmem>>, vector<18x63xf32>
    tpu.vector_store %arg10[%c90, %c0_23], %41 {strides = array<i32>} : memref<162x64xf32, #tpu.memory_space<vmem>>, vector<18x63xf32>,
    %c6 = arith.constant 6 : index
    %c0_24 = arith.constant 0 : index
    %43 = vector.load %arg6[%c6, %c0_24] : memref<9x64xf32, #tpu.memory_space<vmem>>, vector<1x64xf32>
    %44 = vector.extract_strided_slice %6 {offsets = [0, 7], sizes = [18, 57], strides = [1, 1]} : vector<18x64xf32> to vector<18x57xf32>
    %45 = vector.extract_strided_slice %43 {offsets = [0, 0], sizes = [1, 57], strides = [1, 1]} : vector<1x64xf32> to vector<1x57xf32>
    %46 = vector.broadcast %45 : vector<1x57xf32> to vector<18x57xf32>
    %47 = arith.mulf %44, %46 : vector<18x57xf32>
    %c108 = arith.constant 108 : index
    %c0_25 = arith.constant 0 : index
    %48 = vector.load %arg10[%c108, %c0_25] : memref<162x64xf32, #tpu.memory_space<vmem>>, vector<18x57xf32>
    tpu.vector_store %arg10[%c108, %c0_25], %47 {strides = array<i32>} : memref<162x64xf32, #tpu.memory_space<vmem>>, vector<18x57xf32>,
    %c7_26 = arith.constant 7 : index
    %c0_27 = arith.constant 0 : index
    %49 = vector.load %arg6[%c7_26, %c0_27] : memref<9x64xf32, #tpu.memory_space<vmem>>, vector<1x64xf32>
    %50 = vector.extract_strided_slice %6 {offsets = [0, 8], sizes = [18, 56], strides = [1, 1]} : vector<18x64xf32> to vector<18x56xf32>
    %51 = vector.extract_strided_slice %49 {offsets = [0, 0], sizes = [1, 56], strides = [1, 1]} : vector<1x64xf32> to vector<1x56xf32>
    %52 = vector.broadcast %51 : vector<1x56xf32> to vector<18x56xf32>
    %53 = arith.mulf %50, %52 : vector<18x56xf32>
    %c126 = arith.constant 126 : index
    %c0_28 = arith.constant 0 : index
    %54 = vector.load %arg10[%c126, %c0_28] : memref<162x64xf32, #tpu.memory_space<vmem>>, vector<18x56xf32>
    tpu.vector_store %arg10[%c126, %c0_28], %53 {strides = array<i32>} : memref<162x64xf32, #tpu.memory_space<vmem>>, vector<18x56xf32>,
    %c8_29 = arith.constant 8 : index
    %c0_30 = arith.constant 0 : index
    %55 = vector.load %arg6[%c8_29, %c0_30] : memref<9x64xf32, #tpu.memory_space<vmem>>, vector<1x64xf32>
    %56 = vector.extract_strided_slice %6 {offsets = [0, 9], sizes = [18, 55], strides = [1, 1]} : vector<18x64xf32> to vector<18x55xf32>
    %57 = vector.extract_strided_slice %55 {offsets = [0, 0], sizes = [1, 55], strides = [1, 1]} : vector<1x64xf32> to vector<1x55xf32>
    %58 = vector.broadcast %57 : vector<1x55xf32> to vector<18x55xf32>
    %59 = arith.mulf %56, %58 : vector<18x55xf32>
    %c144 = arith.constant 144 : index
    %c0_31 = arith.constant 0 : index
    %60 = vector.load %arg10[%c144, %c0_31] : memref<162x64xf32, #tpu.memory_space<vmem>>, vector<18x55xf32>
    tpu.vector_store %arg10[%c144, %c0_31], %59 {strides = array<i32>} : memref<162x64xf32, #tpu.memory_space<vmem>>, vector<18x55xf32>,
    %c0_32 = arith.constant 0 : index
    %c0_33 = arith.constant 0 : index
    %61 = vector.load %arg4[%c0_32, %c0_33] : memref<36x162xf32, #tpu.memory_space<vmem>>, vector<36x162xf32>
    %c0_34 = arith.constant 0 : index
    %c0_35 = arith.constant 0 : index
    %62 = vector.load %arg10[%c0_34, %c0_35] : memref<162x64xf32, #tpu.memory_space<vmem>>, vector<162x64xf32>
    %cst_36 = arith.constant dense<0.000000e+00> : vector<36x64xf32>
    %63 = tpu.matmul %61, %62, %cst_36 {dimension_numbers = #tpu.dot_dimension_numbers<[1], [0], [0], [1], [0, 0, 1, 1], [], []>} : vector<36x162xf32>, vector<162x64xf32>, vector<36x64xf32> -> vector<36x64xf32>
    %c0_37 = arith.constant 0 : index
    %c0_38 = arith.constant 0 : index
    %64 = vector.load %arg5[%c0_37, %c0_38] : memref<36x1xf32, #tpu.memory_space<vmem>>, vector<36x1xf32>
    %65 = vector.broadcast %64 : vector<36x1xf32> to vector<36x64xf32>
    %66 = arith.addf %63, %65 : vector<36x64xf32>
    %67 = vector.extract_strided_slice %66 {offsets = [0, 0], sizes = [9, 64], strides = [1, 1]} : vector<36x64xf32> to vector<9x64xf32>
    %cst_39 = arith.constant 0.000000e+00 : f32
    %68 = vector.broadcast %cst_39 : f32 to vector<9x64xf32>
    %69 = arith.subf %68, %67 : vector<9x64xf32>
    %70 = math.exp %69 : vector<9x64xf32>
    %cst_40 = arith.constant 1.000000e+00 : f32
    %71 = vector.broadcast %cst_40 : f32 to vector<9x64xf32>
    %72 = arith.addf %71, %70 : vector<9x64xf32>
    %cst_41 = arith.constant 1.000000e+00 : f32
    %73 = vector.broadcast %cst_41 : f32 to vector<9x64xf32>
    %74 = arith.divf %73, %72 : vector<9x64xf32>
    %75 = vector.extract_strided_slice %66 {offsets = [9, 0], sizes = [9, 64], strides = [1, 1]} : vector<36x64xf32> to vector<9x64xf32>
    %cst_42 = arith.constant 0.000000e+00 : f32
    %76 = vector.broadcast %cst_42 : f32 to vector<9x64xf32>
    %77 = arith.subf %76, %75 : vector<9x64xf32>
    %78 = math.exp %77 : vector<9x64xf32>
    %cst_43 = arith.constant 1.000000e+00 : f32
    %79 = vector.broadcast %cst_43 : f32 to vector<9x64xf32>
    %80 = arith.addf %79, %78 : vector<9x64xf32>
    %cst_44 = arith.constant 1.000000e+00 : f32
    %81 = vector.broadcast %cst_44 : f32 to vector<9x64xf32>
    %82 = arith.divf %81, %80 : vector<9x64xf32>
    %83 = vector.extract_strided_slice %66 {offsets = [18, 0], sizes = [9, 64], strides = [1, 1]} : vector<36x64xf32> to vector<9x64xf32>
    %cst_45 = arith.constant 0.000000e+00 : f32
    %84 = vector.broadcast %cst_45 : f32 to vector<9x64xf32>
    %85 = arith.subf %84, %83 : vector<9x64xf32>
    %86 = math.exp %85 : vector<9x64xf32>
    %cst_46 = arith.constant 1.000000e+00 : f32
    %87 = vector.broadcast %cst_46 : f32 to vector<9x64xf32>
    %88 = arith.addf %87, %86 : vector<9x64xf32>
    %cst_47 = arith.constant 1.000000e+00 : f32
    %89 = vector.broadcast %cst_47 : f32 to vector<9x64xf32>
    %90 = arith.divf %89, %88 : vector<9x64xf32>
    %91 = vector.extract_strided_slice %66 {offsets = [27, 0], sizes = [9, 64], strides = [1, 1]} : vector<36x64xf32> to vector<9x64xf32>
    %92 = math.tanh %91 : vector<9x64xf32>
    %c0_48 = arith.constant 0 : index
    %c0_49 = arith.constant 0 : index
    %c0_50 = arith.constant 0 : index
    %93 = vector.load %arg3[%c0_48, %c0_49, %c0_50] : memref<1x9x64xf32, #tpu.memory_space<vmem>>, vector<1x9x64xf32>
    %94 = vector.shape_cast %93 : vector<1x9x64xf32> to vector<9x64xf32>
    %95 = arith.mulf %82, %94 : vector<9x64xf32>
    %96 = arith.mulf %74, %92 : vector<9x64xf32>
    %97 = arith.addf %95, %96 : vector<9x64xf32>
    %c0_51 = arith.constant 0 : index
    %c0_52 = arith.constant 0 : index
    %c0_53 = arith.constant 0 : index
    %98 = vector.load %arg8[%c0_51, %c0_52, %c0_53] : memref<1x9x64xf32, #tpu.memory_space<vmem>>, vector<1x9x64xf32>
    %99 = vector.shape_cast %98 : vector<1x9x64xf32> to vector<9x64xf32>
    %100 = vector.shape_cast %97 : vector<9x64xf32> to vector<1x9x64xf32>
    tpu.vector_store %arg8[%c0_51, %c0_52, %c0_53], %100 {strides = array<i32>} : memref<1x9x64xf32, #tpu.memory_space<vmem>>, vector<1x9x64xf32>,
    %101 = math.tanh %97 : vector<9x64xf32>
    %102 = arith.mulf %90, %101 : vector<9x64xf32>
    %c0_54 = arith.constant 0 : index
    %c0_55 = arith.constant 0 : index
    %c0_56 = arith.constant 0 : index
    %103 = vector.load %arg7[%c0_54, %c0_55, %c0_56] : memref<1x9x64xf32, #tpu.memory_space<vmem>>, vector<1x9x64xf32>
    %104 = vector.shape_cast %103 : vector<1x9x64xf32> to vector<9x64xf32>
    %105 = vector.shape_cast %102 : vector<9x64xf32> to vector<1x9x64xf32>
    tpu.vector_store %arg7[%c0_54, %c0_55, %c0_56], %105 {strides = array<i32>} : memref<1x9x64xf32, #tpu.memory_space<vmem>>, vector<1x9x64xf32>,
    return
  }
  func.func @transform_0(%arg0: i32) -> (i32, i32, i32) {
    %c0_i32 = arith.constant 0 : i32
    %c0_i32_0 = arith.constant 0 : i32
    %c0_i32_1 = arith.constant 0 : i32
    return %arg0, %c0_i32, %c0_i32_0 : i32, i32, i32
  }
  func.func @transform_1(%arg0: i32) -> (i32, i32, i32) {
    %c0_i32 = arith.constant 0 : i32
    %c0_i32_0 = arith.constant 0 : i32
    %c0_i32_1 = arith.constant 0 : i32
    return %arg0, %c0_i32, %c0_i32_0 : i32, i32, i32
  }
  func.func @transform_2(%arg0: i32) -> (i32, i32, i32) {
    %c0_i32 = arith.constant 0 : i32
    %c0_i32_0 = arith.constant 0 : i32
    %c0_i32_1 = arith.constant 0 : i32
    return %arg0, %c0_i32, %c0_i32_0 : i32, i32, i32
  }
  func.func @transform_3(%arg0: i32) -> (i32, i32) {
    %c0_i32 = arith.constant 0 : i32
    %c0_i32_0 = arith.constant 0 : i32
    %c0_i32_1 = arith.constant 0 : i32
    return %c0_i32, %c0_i32_0 : i32, i32
  }
  func.func @transform_4(%arg0: i32) -> (i32, i32) {
    %c0_i32 = arith.constant 0 : i32
    %c0_i32_0 = arith.constant 0 : i32
    %c0_i32_1 = arith.constant 0 : i32
    return %c0_i32, %c0_i32_0 : i32, i32
  }
  func.func @transform_5(%arg0: i32) -> (i32, i32) {
    %c0_i32 = arith.constant 0 : i32
    %c0_i32_0 = arith.constant 0 : i32
    %c0_i32_1 = arith.constant 0 : i32
    return %c0_i32, %c0_i32_0 : i32, i32
  }
  func.func @transform_6(%arg0: i32) -> (i32, i32, i32) {
    %c0_i32 = arith.constant 0 : i32
    %c0_i32_0 = arith.constant 0 : i32
    %c0_i32_1 = arith.constant 0 : i32
    return %arg0, %c0_i32, %c0_i32_0 : i32, i32, i32
  }
  func.func @transform_7(%arg0: i32) -> (i32, i32, i32) {
    %c0_i32 = arith.constant 0 : i32
    %c0_i32_0 = arith.constant 0 : i32
    %c0_i32_1 = arith.constant 0 : i32
    return %arg0, %c0_i32, %c0_i32_0 : i32, i32, i32
  }
}

</mosaic_0001>

<llo_original>
// kernel: corr_lstm_level.2
$region0: #{corr_lstm_level.2}
  #allocation0 [shape = 'u32[]', space=smem, size = 0x4, offset = 0x4, fixed_abs, tag = 'smem constant byte address 0x4 - core index']
  #allocation1 [shape = 'u32[72,128]{1,0:T(1,128)}', space=vmem, size = 0x9000, scoped, tag = 'internal scratch']
  #allocation2 [shape = 'f32[24,24]{1,0:T(8,128)}', space=vmem, size = 0x3000, scoped, tag = 'scratch operand']
  %s0 = inlined_call_operand.vmem [shape: f32[2,4,8,8], index: 0, kind: input, shape index: {}]
  %s1 = inlined_call_operand.vmem [shape: f32[2,4,10,10], index: 1, kind: input, shape index: {}]
  %s2 = inlined_call_operand.vmem [shape: f32[24,24], index: 2, kind: input, shape index: {}]
  %s3 = inlined_call_operand.vmem [shape: f32[24,24], index: 3, kind: input, shape index: {}]
  %s4 = inlined_call_operand.vmem [shape: f32[2,24,24], index: 4, kind: output, shape index: {}]
  %s5 = sld [smem:[#allocation0]]
  $region49: #{corr_lstm_level.2} parent=0
    _
  %s7 = ssub.s32 1, %s5
  %s8 = scalar_select 0, %s7, %s5
  loop: start=0, step=1, limit=4
  $region2: #{corr_lstm_level.2} parent=0 // loop_pre_header
    _
  $region3: #{corr_lstm_level.2} parent=0 // loop_header
    %s10 = sphi 0, %s14
    %p11 = scmp.ge.s32.totalorder %s10, 4
    %s20 = sphi 0, %s22
    %s23 = sphi 0, %s20
    %s24 = sphi 0, %s23
    %s40 = sphi 0, %s24
    %s46 = sphi 0, %s48
    %s49 = sphi 0, %s46
    %s50 = sphi 0, %s49
    %s66 = sphi 0, %s50
    %s70 = sphi 0, %s70
    %s72 = sphi 0, %s70
    %s73 = sphi 0, %s72
    %s87 = sphi 0, %s73
    %s91 = sphi 0, %s91
    %s93 = sphi 0, %s91
    %s94 = sphi 0, %s93
    %s108 = sphi 0, %s94
    %s114 = sphi 0, %s116
    %s117 = sphi 0, %s114
    %s118 = sphi 0, %s117
    %s134 = sphi 0, %s118
  $region4: #{corr_lstm_level.2} parent=0 // loop_header_branch
    %13 = sbr.rel (%p11) target = $region8
  $region5: #{corr_lstm_level.2} parent=0 // loop_body
    %s15 = ssub.s32 %s10, 1
    %s16 = ssub.s32 %s10, 2
    %s17 = sadd.s32 %s10, 1
    %s18 = ssub.s32 %s10, %s17
    %p19 = scmp.eq.s32.totalorder %s18, 0
    %s21 = sadd.s32 %s20, 1
    %s22 = scalar_select %p19, %s20, %s21
    %p25 = pneg %p19
    %p26 = scmp.eq.s32.totalorder %s10, 1
    %p27 = por %p25, %p26
    %p28 = scmp.ne.s32.totalorder %s20, %s23
    %p29 = scmp.eq.s32.totalorder %s10, 0
    %p30 = por %p28, %p29
    %p31 = scmp.ne.s32.totalorder %s20, %s23
    %p32 = scmp.eq.s32.totalorder %s15, 1
    %p33 = por %p31, %p32
    %p34 = scmp.ne.s32.totalorder %s23, %s24
    %p35 = scmp.eq.s32.totalorder %s15, 0
    %p36 = por %p34, %p35
    %p37 = scmp.ne.s32.totalorder %s23, %s24
    %p38 = scmp.eq.s32.totalorder %s16, 1
    %p39 = por %p37, %p38
    %p41 = scmp.ne.s32.totalorder %s24, %s40
    %p42 = scmp.eq.s32.totalorder %s16, 0
    %p43 = por %p41, %p42
    %s44 = ssub.s32 %s10, %s17
    %p45 = scmp.eq.s32.totalorder %s44, 0
    %s47 = sadd.s32 %s46, 1
    %s48 = scalar_select %p45, %s46, %s47
    %p51 = pneg %p45
    %p52 = scmp.eq.s32.totalorder %s10, 1
    %p53 = por %p51, %p52
    %p54 = scmp.ne.s32.totalorder %s46, %s49
    %p55 = scmp.eq.s32.totalorder %s10, 0
    %p56 = por %p54, %p55
    %p57 = scmp.ne.s32.totalorder %s46, %s49
    %p58 = scmp.eq.s32.totalorder %s15, 1
    %p59 = por %p57, %p58
    %p60 = scmp.ne.s32.totalorder %s49, %s50
    %p61 = scmp.eq.s32.totalorder %s15, 0
    %p62 = por %p60, %p61
    %p63 = scmp.ne.s32.totalorder %s49, %s50
    %p64 = scmp.eq.s32.totalorder %s16, 1
    %p65 = por %p63, %p64
    %p67 = scmp.ne.s32.totalorder %s50, %s66
    %p68 = scmp.eq.s32.totalorder %s16, 0
    %p69 = por %p67, %p68
    %s71 = sadd.s32 %s70, 1
    %p74 = scmp.eq.s32.totalorder %s10, 1
    %p75 = scmp.ne.s32.totalorder %s70, %s72
    %p76 = scmp.eq.s32.totalorder %s10, 0
    %p77 = por %p75, %p76
    %p78 = scmp.ne.s32.totalorder %s70, %s72
    %p79 = scmp.eq.s32.totalorder %s15, 1
    %p80 = por %p78, %p79
    %p81 = scmp.ne.s32.totalorder %s72, %s73
    %p82 = scmp.eq.s32.totalorder %s15, 0
    %p83 = por %p81, %p82
    %p84 = scmp.ne.s32.totalorder %s72, %s73
    %p85 = scmp.eq.s32.totalorder %s16, 1
    %p86 = por %p84, %p85
    %p88 = scmp.ne.s32.totalorder %s73, %s87
    %p89 = scmp.eq.s32.totalorder %s16, 0
    %p90 = por %p88, %p89
    %s92 = sadd.s32 %s91, 1
    %p95 = scmp.eq.s32.totalorder %s10, 1
    %p96 = scmp.ne.s32.totalorder %s91, %s93
    %p97 = scmp.eq.s32.totalorder %s10, 0
    %p98 = por %p96, %p97
    %p99 = scmp.ne.s32.totalorder %s91, %s93
    %p100 = scmp.eq.s32.totalorder %s15, 1
    %p101 = por %p99, %p100
    %p102 = scmp.ne.s32.totalorder %s93, %s94
    %p103 = scmp.eq.s32.totalorder %s15, 0
    %p104 = por %p102, %p103
    %p105 = scmp.ne.s32.totalorder %s93, %s94
    %p106 = scmp.eq.s32.totalorder %s16, 1
    %p107 = por %p105, %p106
    %p109 = scmp.ne.s32.totalorder %s94, %s108
    %p110 = scmp.eq.s32.totalorder %s16, 0
    %p111 = por %p109, %p110
    %s112 = ssub.s32 %s10, %s17
    %p113 = scmp.eq.s32.totalorder %s112, 0
    %s115 = sadd.s32 %s114, 1
    %s116 = scalar_select %p113, %s114, %s115
    %p119 = pneg %p113
    %p120 = scmp.eq.s32.totalorder %s10, 1
    %p121 = por %p119, %p120
    %p122 = scmp.ne.s32.totalorder %s114, %s117
    %p123 = scmp.eq.s32.totalorder %s10, 0
    %p124 = por %p122, %p123
    %p125 = scmp.ne.s32.totalorder %s114, %s117
    %p126 = scmp.eq.s32.totalorder %s15, 1
    %p127 = por %p125, %p126
    %p128 = scmp.ne.s32.totalorder %s117, %s118
    %p129 = scmp.eq.s32.totalorder %s15, 0
    %p130 = por %p128, %p129
    %p131 = scmp.ne.s32.totalorder %s117, %s118
    %p132 = scmp.eq.s32.totalorder %s16, 1
    %p133 = por %p131, %p132
    %p135 = scmp.ne.s32.totalorder %s118, %s134
    %p136 = scmp.eq.s32.totalorder %s16, 0
    %p137 = por %p135, %p136
    %p138 = scmp.le.s32.totalorder 1, %s10
    %p139 = scmp.lt.s32.totalorder %s10, 3
    %p140 = pnand %p138, %p139
    %p141 = pneg %p140
    // Predicated region
    $region9: #{corr_lstm_level.2} parent=5 // pred_check
      _
    $region10: #{corr_lstm_level.2} parent=5 // pred_check_branch
      %143 = sbr.rel (%p140) target = $region12
    $region11: #{corr_lstm_level.2} parent=5 // pred_region
      %s144 = ssub.s32 %s10, 1
      // Predicated region
      $region13: #{corr_lstm_level.2} parent=11 // pred_check
        %p145 = pneg %p83
      $region14: #{corr_lstm_level.2} parent=11 // pred_check_branch
        %147 = sbr.rel (%p145) target = $region16
      $region15: #{corr_lstm_level.2} parent=11 // pred_region
        _
      $region16: #{corr_lstm_level.2} parent=11 // pred_fallthru
        _
      // Predicated region
      $region17: #{corr_lstm_level.2} parent=11 // pred_check
        %p148 = pneg %p104
      $region18: #{corr_lstm_level.2} parent=11 // pred_check_branch
        %150 = sbr.rel (%p148) target = $region20
      $region19: #{corr_lstm_level.2} parent=11 // pred_region
        _
      $region20: #{corr_lstm_level.2} parent=11 // pred_fallthru
        _
    $region12: #{corr_lstm_level.2} parent=5 // pred_fallthru
      _
    %p151 = scmp.lt.s32.totalorder %s10, 2
    // Predicated region
    $region21: #{corr_lstm_level.2} parent=5 // pred_check
      %p152 = pneg %p151
    $region22: #{corr_lstm_level.2} parent=5 // pred_check_branch
      %154 = sbr.rel (%p152) target = $region24
    $region23: #{corr_lstm_level.2} parent=5 // pred_region
      // Predicated region
      $region25: #{corr_lstm_level.2} parent=23 // pred_check
        %p155 = pneg %p30
      $region26: #{corr_lstm_level.2} parent=23 // pred_check_branch
        %157 = sbr.rel (%p155) target = $region28
      $region27: #{corr_lstm_level.2} parent=23 // pred_region
        %p158 = scmp.lt.s32.totalorder %s10, 1
        %s159 = scalar_select %p158, %s10, 1
        %s160 = smul.addr %s159, 4
        %s161 = smul.addr %s160, 8
        %s162 = scalar_lea.vmem %s0, %s161
      $region28: #{corr_lstm_level.2} parent=23 // pred_fallthru
        _
      // Predicated region
      $region29: #{corr_lstm_level.2} parent=23 // pred_check
        %p163 = pneg %p56
      $region30: #{corr_lstm_level.2} parent=23 // pred_check_branch
        %165 = sbr.rel (%p163) target = $region32
      $region31: #{corr_lstm_level.2} parent=23 // pred_region
        %p166 = scmp.lt.s32.totalorder %s10, 1
        %s167 = scalar_select %p166, %s10, 1
        %s168 = smul.addr %s167, 8
        %s169 = smul.addr %s168, 8
        %s170 = scalar_lea.vmem %s1, %s169
      $region32: #{corr_lstm_level.2} parent=23 // pred_fallthru
        _
    $region24: #{corr_lstm_level.2} parent=5 // pred_fallthru
      _
    %p171 = scmp.le.s32.totalorder 1, %s10
    %p172 = scmp.lt.s32.totalorder %s10, 3
    %p173 = pnand %p171, %p172
    %p174 = pneg %p173
    // Predicated region
    $region33: #{corr_lstm_level.2} parent=5 // pred_check
      _
    $region34: #{corr_lstm_level.2} parent=5 // pred_check_branch
      %176 = sbr.rel (%p173) target = $region36
    $region35: #{corr_lstm_level.2} parent=5 // pred_region
      %s177 = ssub.s32 %s10, 1
      %p178 = scmp.lt.s32.totalorder %s15, 1
      %s179 = scalar_select %p178, %s15, 1
      %s180 = smul.addr %s179, 4
      %s181 = smul.addr %s180, 8
      %s182 = scalar_lea.vmem %s0, %s181
      %p183 = pneg %p36
      %p184 = pneg %p33
      %p185 = scmp.lt.s32.totalorder %s15, 1
      %s186 = scalar_select %p185, %s15, 1
      %s187 = smul.addr %s186, 8
      %s188 = smul.addr %s187, 8
      %s189 = scalar_lea.vmem %s1, %s188
      %p190 = pneg %p62
      %p191 = pneg %p59
      %p192 = pneg %p83
      %p193 = pneg %p80
      %p194 = pneg %p104
      %p195 = pneg %p101
      %p196 = pneg %p130
      %p197 = pneg %p127
      %p198 = scmp.lt.s32.totalorder %s15, 1
      %s199 = scalar_select %p198, %s15, 1
      %s200 = smul.addr %s199, 3
      %s201 = smul.addr %s200, 8
      %s202 = scalar_lea.vmem %s4, %s201
      %p203 = scmp.lt.s32.totalorder %s15, 1
      %s204 = scalar_select %p203, %s15, 1
      %s205 = smul.addr %s204, 4
      %s206 = smul.addr %s205, 8
      %s207 = scalar_lea.vmem %s0, %s206
      %p208 = scmp.lt.s32.totalorder %s15, 1
      %s209 = scalar_select %p208, %s15, 1
      %s210 = smul.addr %s209, 8
      %s211 = smul.addr %s210, 8
      %s212 = scalar_lea.vmem %s1, %s211
      %p213 = scmp.lt.s32.totalorder %s15, 1
      %s214 = scalar_select %p213, %s15, 1
      %s215 = smul.addr %s214, 3
      %s216 = smul.addr %s215, 8
      %s217 = scalar_lea.vmem %s4, %s216
      %v218 = vld [vmem:[%s207] sm:$0xff]
      %v219 = vld [vmem:[%s207 + $0x8] sm:$0xff]
      %v220 = vld [vmem:[%s207 + $0x10] sm:$0xff]
      %v221 = vld [vmem:[%s207 + $0x18] sm:$0xff]
      %v222 = vld [vmem:[%s212] sm:$0xff]
      %v223 = vld [vmem:[%s212 + $0x10] sm:$0xff]
      %v224 = vld [vmem:[%s212 + $0x20] sm:$0xff]
      %v225 = vld [vmem:[%s212 + $0x30] sm:$0xff]
      %v226 = vmul.f32 %v218, %v222
      %v227 = vmul.f32 %v219, %v223
      %v228 = vmul.f32 %v220, %v224
      %v229 = vmul.f32 %v221, %v225
      %vm230 = vcmask 64512
      %v231 = vsel %vm230, %v226, 0.0
      %v232 = vsel %vm230, %v227, 0.0
      %v233 = vadd.f32 %v231, %v232
      %v234 = vsel %vm230, %v228, 0.0
      %v235 = vadd.f32 %v233, %v234
      %v236 = vsel %vm230, %v229, 0.0
      %v237 = vadd.f32 %v235, %v236
      %vm238 = vcmp.gt.f32.partialorder %v237, 0.0
      %v239 = vmul.f32 %v237, 0.01
      %v240 = vsel %vm238, %v237, %v239
      %241 = vst.msk [vmem:[#allocation2] sm:$0xff] %vm230, %v240
      %v242 = vld [vmem:[%s212] sm:$0xff]
      %v243 = vld [vmem:[%s212 + $0x10] sm:$0xff]
      %v244 = vld [vmem:[%s212 + $0x20] sm:$0xff]
      %v245 = vld [vmem:[%s212 + $0x30] sm:$0xff]
      %250 = vrot.lane.b32.xlu0 %v242, 127
      %v251 = vpop.permute.xlu0 %250
      %252 = vrot.lane.b32.xlu0 %v243, 127
      %v253 = vpop.permute.xlu0 %252
      %254 = vrot.lane.b32.xlu0 %v244, 127
      %v255 = vpop.permute.xlu0 %254
      %256 = vrot.lane.b32.xlu0 %v245, 127
      %v257 = vpop.permute.xlu0 %256
      %v262 = vmul.f32 %v218, %v251
      %v263 = vmul.f32 %v219, %v253
      %v264 = vmul.f32 %v220, %v255
      %v265 = vmul.f32 %v221, %v257
      %v266 = vsel %vm230, %v262, 0.0
      %v267 = vsel %vm230, %v263, 0.0
      %v268 = vadd.f32 %v266, %v267
      %v269 = vsel %vm230, %v264, 0.0
      %v270 = vadd.f32 %v268, %v269
      %v271 = vsel %vm230, %v265, 0.0
      %v272 = vadd.f32 %v270, %v271
      %vm273 = vcmp.gt.f32.partialorder %v272, 0.0
      %v274 = vmul.f32 %v272, 0.01
      %v275 = vsel %vm273, %v272, %v274
      %277 = vrot.lane.b32.xlu0 %v275, 8
      %v278 = vpop.permute.xlu0 %277
      %vm280 = vcmask 130112
      %281 = vst.msk [vmem:[#allocation2] sm:$0xff] %vm280, %v278
      %v282 = vld [vmem:[%s212] sm:$0xff]
      %v283 = vld [vmem:[%s212 + $0x10] sm:$0xff]
      %v284 = vld [vmem:[%s212 + $0x20] sm:$0xff]
      %v285 = vld [vmem:[%s212 + $0x30] sm:$0xff]
      %290 = vrot.lane.b32.xlu0 %v282, 126
      %v291 = vpop.permute.xlu0 %290
      %292 = vrot.lane.b32.xlu0 %v283, 126
      %v293 = vpop.permute.xlu0 %292
      %294 = vrot.lane.b32.xlu0 %v284, 126
      %v295 = vpop.permute.xlu0 %294
      %296 = vrot.lane.b32.xlu0 %v285, 126
      %v297 = vpop.permute.xlu0 %296
      %v302 = vmul.f32 %v218, %v291
      %v303 = vmul.f32 %v219, %v293
      %v304 = vmul.f32 %v220, %v295
      %v305 = vmul.f32 %v221, %v297
      %v306 = vsel %vm230, %v302, 0.0
      %v307 = vsel %vm230, %v303, 0.0
      %v308 = vadd.f32 %v306, %v307
      %v309 = vsel %vm230, %v304, 0.0
      %v310 = vadd.f32 %v308, %v309
      %v311 = vsel %vm230, %v305, 0.0
      %v312 = vadd.f32 %v310, %v311
      %vm313 = vcmp.gt.f32.partialorder %v312, 0.0
      %v314 = vmul.f32 %v312, 0.01
      %v315 = vsel %vm313, %v312, %v314
      %317 = vrot.lane.b32.xlu0 %v315, 16
      %v318 = vpop.permute.xlu0 %317
      %vm320 = vcmask 195712
      %321 = vst.msk [vmem:[#allocation2] sm:$0xff] %vm320, %v318
      %v322 = vld [vmem:[%s212 + $0x1] sm:$0xff]
      %v323 = vld [vmem:[%s212 + $0x11] sm:$0xff]
      %v324 = vld [vmem:[%s212 + $0x21] sm:$0xff]
      %v325 = vld [vmem:[%s212 + $0x31] sm:$0xff]
      %v326 = vmul.f32 %v218, %v322
      %v327 = vmul.f32 %v219, %v323
      %v328 = vmul.f32 %v220, %v324
      %v329 = vmul.f32 %v221, %v325
      %v330 = vsel %vm230, %v326, 0.0
      %v331 = vsel %vm230, %v327, 0.0
      %v332 = vadd.f32 %v330, %v331
      %v333 = vsel %vm230, %v328, 0.0
      %v334 = vadd.f32 %v332, %v333
      %v335 = vsel %vm230, %v329, 0.0
      %v336 = vadd.f32 %v334, %v335
      %vm337 = vcmp.gt.f32.partialorder %v336, 0.0
      %v338 = vmul.f32 %v336, 0.01
      %v339 = vsel %vm337, %v336, %v338
      %340 = vst.msk [vmem:[#allocation2 + $0x8] sm:$0xff] %vm230, %v339
      %v341 = vld [vmem:[%s212 + $0x1] sm:$0xff]
      %v342 = vld [vmem:[%s212 + $0x11] sm:$0xff]
      %v343 = vld [vmem:[%s212 + $0x21] sm:$0xff]
      %v344 = vld [vmem:[%s212 + $0x31] sm:$0xff]
      %349 = vrot.lane.b32.xlu0 %v341, 127
      %v350 = vpop.permute.xlu0 %349
      %351 = vrot.lane.b32.xlu0 %v342, 127
      %v352 = vpop.permute.xlu0 %351
      %353 = vrot.lane.b32.xlu0 %v343, 127
      %v354 = vpop.permute.xlu0 %353
      %355 = vrot.lane.b32.xlu0 %v344, 127
      %v356 = vpop.permute.xlu0 %355
      %v361 = vmul.f32 %v218, %v350
      %v362 = vmul.f32 %v219, %v352
      %v363 = vmul.f32 %v220, %v354
      %v364 = vmul.f32 %v221, %v356
      %v365 = vsel %vm230, %v361, 0.0
      %v366 = vsel %vm230, %v362, 0.0
      %v367 = vadd.f32 %v365, %v366
      %v368 = vsel %vm230, %v363, 0.0
      %v369 = vadd.f32 %v367, %v368
      %v370 = vsel %vm230, %v364, 0.0
      %v371 = vadd.f32 %v369, %v370
      %vm372 = vcmp.gt.f32.partialorder %v371, 0.0
      %v373 = vmul.f32 %v371, 0.01
      %v374 = vsel %vm372, %v371, %v373
      %376 = vrot.lane.b32.xlu0 %v374, 8
      %v377 = vpop.permute.xlu0 %376
      %379 = vst.msk [vmem:[#allocation2 + $0x8] sm:$0xff] %vm280, %v377
      %v380 = vld [vmem:[%s212 + $0x1] sm:$0xff]
      %v381 = vld [vmem:[%s212 + $0x11] sm:$0xff]
      %v382 = vld [vmem:[%s212 + $0x21] sm:$0xff]
      %v383 = vld [vmem:[%s212 + $0x31] sm:$0xff]
      %388 = vrot.lane.b32.xlu0 %v380, 126
      %v389 = vpop.permute.xlu0 %388
      %390 = vrot.lane.b32.xlu0 %v381, 126
      %v391 = vpop.permute.xlu0 %390
      %392 = vrot.lane.b32.xlu0 %v382, 126
      %v393 = vpop.permute.xlu0 %392
      %394 = vrot.lane.b32.xlu0 %v383, 126
      %v395 = vpop.permute.xlu0 %394
      %v400 = vmul.f32 %v218, %v389
      %v401 = vmul.f32 %v219, %v391
      %v402 = vmul.f32 %v220, %v393
      %v403 = vmul.f32 %v221, %v395
      %v404 = vsel %vm230, %v400, 0.0
      %v405 = vsel %vm230, %v401, 0.0
      %v406 = vadd.f32 %v404, %v405
      %v407 = vsel %vm230, %v402, 0.0
      %v408 = vadd.f32 %v406, %v407
      %v409 = vsel %vm230, %v403, 0.0
      %v410 = vadd.f32 %v408, %v409
      %vm411 = vcmp.gt.f32.partialorder %v410, 0.0
      %v412 = vmul.f32 %v410, 0.01
      %v413 = vsel %vm411, %v410, %v412
      %415 = vrot.lane.b32.xlu0 %v413, 16
      %v416 = vpop.permute.xlu0 %415
      %418 = vst.msk [vmem:[#allocation2 + $0x8] sm:$0xff] %vm320, %v416
      %v419 = vld [vmem:[%s212 + $0x2] sm:$0xff]
      %v420 = vld [vmem:[%s212 + $0x12] sm:$0xff]
      %v421 = vld [vmem:[%s212 + $0x22] sm:$0xff]
      %v422 = vld [vmem:[%s212 + $0x32] sm:$0xff]
      %v423 = vmul.f32 %v218, %v419
      %v424 = vmul.f32 %v219, %v420
      %v425 = vmul.f32 %v220, %v421
      %v426 = vmul.f32 %v221, %v422
      %v427 = vsel %vm230, %v423, 0.0
      %v428 = vsel %vm230, %v424, 0.0
      %v429 = vadd.f32 %v427, %v428
      %v430 = vsel %vm230, %v425, 0.0
      %v431 = vadd.f32 %v429, %v430
      %v432 = vsel %vm230, %v426, 0.0
      %v433 = vadd.f32 %v431, %v432
      %vm434 = vcmp.gt.f32.partialorder %v433, 0.0
      %v435 = vmul.f32 %v433, 0.01
      %v436 = vsel %vm434, %v433, %v435
      %437 = vst.msk [vmem:[#allocation2 + $0x10] sm:$0xff] %vm230, %v436
      %v438 = vld [vmem:[%s212 + $0x2] sm:$0xff]
      %v439 = vld [vmem:[%s212 + $0x12] sm:$0xff]
      %v440 = vld [vmem:[%s212 + $0x22] sm:$0xff]
      %v441 = vld [vmem:[%s212 + $0x32] sm:$0xff]
      %446 = vrot.lane.b32.xlu0 %v438, 127
      %v447 = vpop.permute.xlu0 %446
      %448 = vrot.lane.b32.xlu0 %v439, 127
      %v449 = vpop.permute.xlu0 %448
      %450 = vrot.lane.b32.xlu0 %v440, 127
      %v451 = vpop.permute.xlu0 %450
      %452 = vrot.lane.b32.xlu0 %v441, 127
      %v453 = vpop.permute.xlu0 %452
      %v458 = vmul.f32 %v218, %v447
      %v459 = vmul.f32 %v219, %v449
      %v460 = vmul.f32 %v220, %v451
      %v461 = vmul.f32 %v221, %v453
      %v462 = vsel %vm230, %v458, 0.0
      %v463 = vsel %vm230, %v459, 0.0
      %v464 = vadd.f32 %v462, %v463
      %v465 = vsel %vm230, %v460, 0.0
      %v466 = vadd.f32 %v464, %v465
      %v467 = vsel %vm230, %v461, 0.0
      %v468 = vadd.f32 %v466, %v467
      %vm469 = vcmp.gt.f32.partialorder %v468, 0.0
      %v470 = vmul.f32 %v468, 0.01
      %v471 = vsel %vm469, %v468, %v470
      %473 = vrot.lane.b32.xlu0 %v471, 8
      %v474 = vpop.permute.xlu0 %473
      %476 = vst.msk [vmem:[#allocation2 + $0x10] sm:$0xff] %vm280, %v474
      %v477 = vld [vmem:[%s212 + $0x2] sm:$0xff]
      %v478 = vld [vmem:[%s212 + $0x12] sm:$0xff]
      %v479 = vld [vmem:[%s212 + $0x22] sm:$0xff]
      %v480 = vld [vmem:[%s212 + $0x32] sm:$0xff]
      %485 = vrot.lane.b32.xlu0 %v477, 126
      %v486 = vpop.permute.xlu0 %485
      %487 = vrot.lane.b32.xlu0 %v478, 126
      %v488 = vpop.permute.xlu0 %487
      %489 = vrot.lane.b32.xlu0 %v479, 126
      %v490 = vpop.permute.xlu0 %489
      %491 = vrot.lane.b32.xlu0 %v480, 126
      %v492 = vpop.permute.xlu0 %491
      %v497 = vmul.f32 %v218, %v486
      %v498 = vmul.f32 %v219, %v488
      %v499 = vmul.f32 %v220, %v490
      %v500 = vmul.f32 %v221, %v492
      %v501 = vsel %vm230, %v497, 0.0
      %v502 = vsel %vm230, %v498, 0.0
      %v503 = vadd.f32 %v501, %v502
      %v504 = vsel %vm230, %v499, 0.0
      %v505 = vadd.f32 %v503, %v504
      %v506 = vsel %vm230, %v500, 0.0
      %v507 = vadd.f32 %v505, %v506
      %vm508 = vcmp.gt.f32.partialorder %v507, 0.0
      %v509 = vmul.f32 %v507, 0.01
      %v510 = vsel %vm508, %v507, %v509
      %512 = vrot.lane.b32.xlu0 %v510, 16
      %v513 = vpop.permute.xlu0 %512
      %515 = vst.msk [vmem:[#allocation2 + $0x10] sm:$0xff] %vm320, %v513
      %v516 = vld [vmem:[%s2] sm:$0xff]
      %v517 = vld [vmem:[%s2 + $0x8] sm:$0xff]
      %v518 = vld [vmem:[%s2 + $0x10] sm:$0xff]
      %v519 = vld [vmem:[#allocation2] sm:$0xff]
      %v520 = vld [vmem:[#allocation2 + $0x8] sm:$0xff]
      %v521 = vld [vmem:[#allocation2 + $0x10] sm:$0xff]
      %vm522 = vcmask 195584
      %v524 = vsel %vm522, %v516, 0
      %v527 = vsel %vm522, %v517, 0
      %v530 = vsel %vm522, %v518, 0
      %532 = vmatpush.msra.mxu0 0.0
      %533 = vmatpush.msra.mxu0 0.0
      %534 = vmatpush.msra.mxu0 0.0
      %535 = vmatpush.msra.mxu0 0.0
      %536 = vmatpush.msra.mxu0 0.0
      %537 = vmatpush.msra.mxu0 0.0
      %538 = vmatpush.msra.mxu0 0.0
      %539 = vmatpush.msra.mxu0 0.0
      %540 = vmatpush.msra.mxu0 0.0
      %541 = vmatpush.msra.mxu0 0.0
      %542 = vmatpush.msra.mxu0 0.0
      %543 = vmatpush.msra.mxu0 0.0
      %544 = vmatpush.msra.mxu0 0.0
      %545 = vmatpush.msra.mxu0 %v521
      %546 = vmatpush.msra.mxu0 %v520
      %547 = vmatpush.msra.mxu0 %v519
      %548 = vmatmul.f32.gmra.mxu0 %v524
      %v549 = vpop.f32.mrf.mxu0
      %v550 = vadd.f32 0.0, %v549
      %551 = vmatmul.f32.gmra.mxu0 %v527
      %v552 = vpop.f32.mrf.mxu0
      %v553 = vadd.f32 0.0, %v552
      %554 = vmatmul.f32.gmra.mxu0 %v530
      %v555 = vpop.f32.mrf.mxu0
      %v556 = vadd.f32 0.0, %v555
      %557 = vdwg.mxu0
      %v558 = vld [vmem:[%s3] sm:$0xff]
      %v559 = vld [vmem:[%s3 + $0x8] sm:$0xff]
      %v560 = vld [vmem:[%s3 + $0x10] sm:$0xff]
      %v562 = vsel %vm522, %v550, 0
      %v565 = vsel %vm522, %v553, 0
      %v568 = vsel %vm522, %v556, 0
      %570 = vmatpush.msra.mxu0 0.0
      %571 = vmatpush.msra.mxu0 0.0
      %572 = vmatpush.msra.mxu0 0.0
      %573 = vmatpush.msra.mxu0 0.0
      %574 = vmatpush.msra.mxu0 0.0
      %575 = vmatpush.msra.mxu0 0.0
      %576 = vmatpush.msra.mxu0 0.0
      %577 = vmatpush.msra.mxu0 0.0
      %578 = vmatpush.msra.mxu0 0.0
      %579 = vmatpush.msra.mxu0 0.0
      %580 = vmatpush.msra.mxu0 0.0
      %581 = vmatpush.msra.mxu0 0.0
      %582 = vmatpush.msra.mxu0 0.0
      %583 = vmatpush.msra.mxu0 %v560
      %584 = vmatpush.msra.mxu0 %v559
      %585 = vmatpush.msra.mxu0 %v558
      %586 = vmatmul.f32.gmra.mxu0 %v562
      %v587 = vpop.f32.mrf.mxu0
      %v588 = vadd.f32 0.0, %v587
      %589 = vmatmul.f32.gmra.mxu0 %v565
      %v590 = vpop.f32.mrf.mxu0
      %v591 = vadd.f32 0.0, %v590
      %592 = vmatmul.f32.gmra.mxu0 %v568
      %v593 = vpop.f32.mrf.mxu0
      %v594 = vadd.f32 0.0, %v593
      %595 = vdwg.mxu0
      %596 = vst.msk [vmem:[%s217] sm:$0xff] %vm522, %v588
      %597 = vst.msk [vmem:[%s217 + $0x8] sm:$0xff] %vm522, %v591
      %598 = vst.msk [vmem:[%s217 + $0x10] sm:$0xff] %vm522, %v594
      %p599 = scmp.lt.s32.totalorder %s15, 1
      %s600 = scalar_select %p599, %s15, 1
      %s601 = smul.addr %s600, 3
      %s602 = smul.addr %s601, 8
      %s603 = scalar_lea.vmem %s4, %s602
      // Predicated region
      $region37: #{corr_lstm_level.2} parent=35 // pred_check
        %p604 = pneg %p127
      $region38: #{corr_lstm_level.2} parent=35 // pred_check_branch
        %606 = sbr.rel (%p604) target = $region40
      $region39: #{corr_lstm_level.2} parent=35 // pred_region
        _
      $region40: #{corr_lstm_level.2} parent=35 // pred_fallthru
        _
    $region36: #{corr_lstm_level.2} parent=5 // pred_fallthru
      _
    %p607 = scmp.le.s32.totalorder 2, %s10
    // Predicated region
    $region41: #{corr_lstm_level.2} parent=5 // pred_check
      %p608 = pneg %p607
    $region42: #{corr_lstm_level.2} parent=5 // pred_check_branch
      %610 = sbr.rel (%p608) target = $region44
    $region43: #{corr_lstm_level.2} parent=5 // pred_region
      %s611 = ssub.s32 %s10, 2
      // Predicated region
      $region45: #{corr_lstm_level.2} parent=43 // pred_check
        %p612 = pneg %p133
      $region46: #{corr_lstm_level.2} parent=43 // pred_check_branch
        %614 = sbr.rel (%p612) target = $region48
      $region47: #{corr_lstm_level.2} parent=43 // pred_region
        %p615 = scmp.lt.s32.totalorder %s16, 1
        %s616 = scalar_select %p615, %s16, 1
        %s617 = smul.addr %s616, 3
        %s618 = smul.addr %s617, 8
        %s619 = scalar_lea.vmem %s4, %s618
      $region48: #{corr_lstm_level.2} parent=43 // pred_fallthru
        _
    $region44: #{corr_lstm_level.2} parent=5 // pred_fallthru
      _
  $region6: #{corr_lstm_level.2} parent=0 // loop_footer
    %s14 = sadd.s32 1, %s10
  $region7: #{corr_lstm_level.2} parent=0 // loop_footer_branch
    %9 = sbr.rel target = $region3
  $region8: #{corr_lstm_level.2} parent=0 // loop_exit
    _

// kernel: corr_lstm_level.3
$region0: #{corr_lstm_level.3}
  #allocation0 [shape = 'u32[]', space=smem, size = 0x4, offset = 0x4, fixed_abs, tag = 'smem constant byte address 0x4 - core index']
  #allocation1 [shape = 'u32[72,128]{1,0:T(1,128)}', space=vmem, size = 0x9000, scoped, tag = 'internal scratch']
  #allocation2 [shape = 'f32[18,64]{1,0:T(8,128)}', space=vmem, size = 0x3000, scoped, tag = 'scratch operand']
  #allocation3 [shape = 'f32[162,64]{1,0:T(8,128)}', space=vmem, size = 0x15000, scoped, tag = 'scratch operand']
  %s0 = inlined_call_operand.vmem [shape: f32[2,9,64], index: 0, kind: input, shape index: {}]
  %s1 = inlined_call_operand.vmem [shape: f32[2,9,64], index: 1, kind: input, shape index: {}]
  %s2 = inlined_call_operand.vmem [shape: f32[2,9,64], index: 2, kind: input, shape index: {}]
  %s3 = inlined_call_operand.vmem [shape: f32[36,162], index: 3, kind: input, shape index: {}]
  %s4 = inlined_call_operand.vmem [shape: f32[36,1], index: 4, kind: input, shape index: {}]
  %s5 = inlined_call_operand.vmem [shape: f32[9,64], index: 5, kind: input, shape index: {}]
  %s6 = inlined_call_operand.vmem [shape: f32[2,9,64], index: 6, kind: output, shape index: {0}]
  %s7 = inlined_call_operand.vmem [shape: f32[2,9,64], index: 7, kind: output, shape index: {1}]
  %8 = xla_tuple %s6, %s7
  %s9 = sld [smem:[#allocation0]]
  $region65: #{corr_lstm_level.3} parent=0
    _
  %s11 = ssub.s32 1, %s9
  %s12 = scalar_select 0, %s11, %s9
  loop: start=0, step=1, limit=4
  $region2: #{corr_lstm_level.3} parent=0 // loop_pre_header
    _
  $region3: #{corr_lstm_level.3} parent=0 // loop_header
    %s14 = sphi 0, %s18
    %p15 = scmp.ge.s32.totalorder %s14, 4
    %s24 = sphi 0, %s26
    %s27 = sphi 0, %s24
    %s28 = sphi 0, %s27
    %s44 = sphi 0, %s28
    %s50 = sphi 0, %s52
    %s53 = sphi 0, %s50
    %s54 = sphi 0, %s53
    %s70 = sphi 0, %s54
    %s76 = sphi 0, %s78
    %s79 = sphi 0, %s76
    %s80 = sphi 0, %s79
    %s96 = sphi 0, %s80
    %s100 = sphi 0, %s100
    %s102 = sphi 0, %s100
    %s103 = sphi 0, %s102
    %s117 = sphi 0, %s103
    %s121 = sphi 0, %s121
    %s123 = sphi 0, %s121
    %s124 = sphi 0, %s123
    %s138 = sphi 0, %s124
    %s142 = sphi 0, %s142
    %s144 = sphi 0, %s142
    %s145 = sphi 0, %s144
    %s159 = sphi 0, %s145
    %s165 = sphi 0, %s167
    %s168 = sphi 0, %s165
    %s169 = sphi 0, %s168
    %s185 = sphi 0, %s169
    %s191 = sphi 0, %s193
    %s194 = sphi 0, %s191
    %s195 = sphi 0, %s194
    %s211 = sphi 0, %s195
  $region4: #{corr_lstm_level.3} parent=0 // loop_header_branch
    %17 = sbr.rel (%p15) target = $region8
  $region5: #{corr_lstm_level.3} parent=0 // loop_body
    %s19 = ssub.s32 %s14, 1
    %s20 = ssub.s32 %s14, 2
    %s21 = sadd.s32 %s14, 1
    %s22 = ssub.s32 %s14, %s21
    %p23 = scmp.eq.s32.totalorder %s22, 0
    %s25 = sadd.s32 %s24, 1
    %s26 = scalar_select %p23, %s24, %s25
    %p29 = pneg %p23
    %p30 = scmp.eq.s32.totalorder %s14, 1
    %p31 = por %p29, %p30
    %p32 = scmp.ne.s32.totalorder %s24, %s27
    %p33 = scmp.eq.s32.totalorder %s14, 0
    %p34 = por %p32, %p33
    %p35 = scmp.ne.s32.totalorder %s24, %s27
    %p36 = scmp.eq.s32.totalorder %s19, 1
    %p37 = por %p35, %p36
    %p38 = scmp.ne.s32.totalorder %s27, %s28
    %p39 = scmp.eq.s32.totalorder %s19, 0
    %p40 = por %p38, %p39
    %p41 = scmp.ne.s32.totalorder %s27, %s28
    %p42 = scmp.eq.s32.totalorder %s20, 1
    %p43 = por %p41, %p42
    %p45 = scmp.ne.s32.totalorder %s28, %s44
    %p46 = scmp.eq.s32.totalorder %s20, 0
    %p47 = por %p45, %p46
    %s48 = ssub.s32 %s14, %s21
    %p49 = scmp.eq.s32.totalorder %s48, 0
    %s51 = sadd.s32 %s50, 1
    %s52 = scalar_select %p49, %s50, %s51
    %p55 = pneg %p49
    %p56 = scmp.eq.s32.totalorder %s14, 1
    %p57 = por %p55, %p56
    %p58 = scmp.ne.s32.totalorder %s50, %s53
    %p59 = scmp.eq.s32.totalorder %s14, 0
    %p60 = por %p58, %p59
    %p61 = scmp.ne.s32.totalorder %s50, %s53
    %p62 = scmp.eq.s32.totalorder %s19, 1
    %p63 = por %p61, %p62
    %p64 = scmp.ne.s32.totalorder %s53, %s54
    %p65 = scmp.eq.s32.totalorder %s19, 0
    %p66 = por %p64, %p65
    %p67 = scmp.ne.s32.totalorder %s53, %s54
    %p68 = scmp.eq.s32.totalorder %s20, 1
    %p69 = por %p67, %p68
    %p71 = scmp.ne.s32.totalorder %s54, %s70
    %p72 = scmp.eq.s32.totalorder %s20, 0
    %p73 = por %p71, %p72
    %s74 = ssub.s32 %s14, %s21
    %p75 = scmp.eq.s32.totalorder %s74, 0
    %s77 = sadd.s32 %s76, 1
    %s78 = scalar_select %p75, %s76, %s77
    %p81 = pneg %p75
    %p82 = scmp.eq.s32.totalorder %s14, 1
    %p83 = por %p81, %p82
    %p84 = scmp.ne.s32.totalorder %s76, %s79
    %p85 = scmp.eq.s32.totalorder %s14, 0
    %p86 = por %p84, %p85
    %p87 = scmp.ne.s32.totalorder %s76, %s79
    %p88 = scmp.eq.s32.totalorder %s19, 1
    %p89 = por %p87, %p88
    %p90 = scmp.ne.s32.totalorder %s79, %s80
    %p91 = scmp.eq.s32.totalorder %s19, 0
    %p92 = por %p90, %p91
    %p93 = scmp.ne.s32.totalorder %s79, %s80
    %p94 = scmp.eq.s32.totalorder %s20, 1
    %p95 = por %p93, %p94
    %p97 = scmp.ne.s32.totalorder %s80, %s96
    %p98 = scmp.eq.s32.totalorder %s20, 0
    %p99 = por %p97, %p98
    %s101 = sadd.s32 %s100, 1
    %p104 = scmp.eq.s32.totalorder %s14, 1
    %p105 = scmp.ne.s32.totalorder %s100, %s102
    %p106 = scmp.eq.s32.totalorder %s14, 0
    %p107 = por %p105, %p106
    %p108 = scmp.ne.s32.totalorder %s100, %s102
    %p109 = scmp.eq.s32.totalorder %s19, 1
    %p110 = por %p108, %p109
    %p111 = scmp.ne.s32.totalorder %s102, %s103
    %p112 = scmp.eq.s32.totalorder %s19, 0
    %p113 = por %p111, %p112
    %p114 = scmp.ne.s32.totalorder %s102, %s103
    %p115 = scmp.eq.s32.totalorder %s20, 1
    %p116 = por %p114, %p115
    %p118 = scmp.ne.s32.totalorder %s103, %s117
    %p119 = scmp.eq.s32.totalorder %s20, 0
    %p120 = por %p118, %p119
    %s122 = sadd.s32 %s121, 1
    %p125 = scmp.eq.s32.totalorder %s14, 1
    %p126 = scmp.ne.s32.totalorder %s121, %s123
    %p127 = scmp.eq.s32.totalorder %s14, 0
    %p128 = por %p126, %p127
    %p129 = scmp.ne.s32.totalorder %s121, %s123
    %p130 = scmp.eq.s32.totalorder %s19, 1
    %p131 = por %p129, %p130
    %p132 = scmp.ne.s32.totalorder %s123, %s124
    %p133 = scmp.eq.s32.totalorder %s19, 0
    %p134 = por %p132, %p133
    %p135 = scmp.ne.s32.totalorder %s123, %s124
    %p136 = scmp.eq.s32.totalorder %s20, 1
    %p137 = por %p135, %p136
    %p139 = scmp.ne.s32.totalorder %s124, %s138
    %p140 = scmp.eq.s32.totalorder %s20, 0
    %p141 = por %p139, %p140
    %s143 = sadd.s32 %s142, 1
    %p146 = scmp.eq.s32.totalorder %s14, 1
    %p147 = scmp.ne.s32.totalorder %s142, %s144
    %p148 = scmp.eq.s32.totalorder %s14, 0
    %p149 = por %p147, %p148
    %p150 = scmp.ne.s32.totalorder %s142, %s144
    %p151 = scmp.eq.s32.totalorder %s19, 1
    %p152 = por %p150, %p151
    %p153 = scmp.ne.s32.totalorder %s144, %s145
    %p154 = scmp.eq.s32.totalorder %s19, 0
    %p155 = por %p153, %p154
    %p156 = scmp.ne.s32.totalorder %s144, %s145
    %p157 = scmp.eq.s32.totalorder %s20, 1
    %p158 = por %p156, %p157
    %p160 = scmp.ne.s32.totalorder %s145, %s159
    %p161 = scmp.eq.s32.totalorder %s20, 0
    %p162 = por %p160, %p161
    %s163 = ssub.s32 %s14, %s21
    %p164 = scmp.eq.s32.totalorder %s163, 0
    %s166 = sadd.s32 %s165, 1
    %s167 = scalar_select %p164, %s165, %s166
    %p170 = pneg %p164
    %p171 = scmp.eq.s32.totalorder %s14, 1
    %p172 = por %p170, %p171
    %p173 = scmp.ne.s32.totalorder %s165, %s168
    %p174 = scmp.eq.s32.totalorder %s14, 0
    %p175 = por %p173, %p174
    %p176 = scmp.ne.s32.totalorder %s165, %s168
    %p177 = scmp.eq.s32.totalorder %s19, 1
    %p178 = por %p176, %p177
    %p179 = scmp.ne.s32.totalorder %s168, %s169
    %p180 = scmp.eq.s32.totalorder %s19, 0
    %p181 = por %p179, %p180
    %p182 = scmp.ne.s32.totalorder %s168, %s169
    %p183 = scmp.eq.s32.totalorder %s20, 1
    %p184 = por %p182, %p183
    %p186 = scmp.ne.s32.totalorder %s169, %s185
    %p187 = scmp.eq.s32.totalorder %s20, 0
    %p188 = por %p186, %p187
    %s189 = ssub.s32 %s14, %s21
    %p190 = scmp.eq.s32.totalorder %s189, 0
    %s192 = sadd.s32 %s191, 1
    %s193 = scalar_select %p190, %s191, %s192
    %p196 = pneg %p190
    %p197 = scmp.eq.s32.totalorder %s14, 1
    %p198 = por %p196, %p197
    %p199 = scmp.ne.s32.totalorder %s191, %s194
    %p200 = scmp.eq.s32.totalorder %s14, 0
    %p201 = por %p199, %p200
    %p202 = scmp.ne.s32.totalorder %s191, %s194
    %p203 = scmp.eq.s32.totalorder %s19, 1
    %p204 = por %p202, %p203
    %p205 = scmp.ne.s32.totalorder %s194, %s195
    %p206 = scmp.eq.s32.totalorder %s19, 0
    %p207 = por %p205, %p206
    %p208 = scmp.ne.s32.totalorder %s194, %s195
    %p209 = scmp.eq.s32.totalorder %s20, 1
    %p210 = por %p208, %p209
    %p212 = scmp.ne.s32.totalorder %s195, %s211
    %p213 = scmp.eq.s32.totalorder %s20, 0
    %p214 = por %p212, %p213
    %p215 = scmp.le.s32.totalorder 1, %s14
    %p216 = scmp.lt.s32.totalorder %s14, 3
    %p217 = pnand %p215, %p216
    %p218 = pneg %p217
    // Predicated region
    $region9: #{corr_lstm_level.3} parent=5 // pred_check
      _
    $region10: #{corr_lstm_level.3} parent=5 // pred_check_branch
      %220 = sbr.rel (%p217) target = $region12
    $region11: #{corr_lstm_level.3} parent=5 // pred_region
      %s221 = ssub.s32 %s14, 1
      // Predicated region
      $region13: #{corr_lstm_level.3} parent=11 // pred_check
        %p222 = pneg %p113
      $region14: #{corr_lstm_level.3} parent=11 // pred_check_branch
        %224 = sbr.rel (%p222) target = $region16
      $region15: #{corr_lstm_level.3} parent=11 // pred_region
        _
      $region16: #{corr_lstm_level.3} parent=11 // pred_fallthru
        _
      // Predicated region
      $region17: #{corr_lstm_level.3} parent=11 // pred_check
        %p225 = pneg %p134
      $region18: #{corr_lstm_level.3} parent=11 // pred_check_branch
        %227 = sbr.rel (%p225) target = $region20
      $region19: #{corr_lstm_level.3} parent=11 // pred_region
        _
      $region20: #{corr_lstm_level.3} parent=11 // pred_fallthru
        _
      // Predicated region
      $region21: #{corr_lstm_level.3} parent=11 // pred_check
        %p228 = pneg %p155
      $region22: #{corr_lstm_level.3} parent=11 // pred_check_branch
        %230 = sbr.rel (%p228) target = $region24
      $region23: #{corr_lstm_level.3} parent=11 // pred_region
        _
      $region24: #{corr_lstm_level.3} parent=11 // pred_fallthru
        _
    $region12: #{corr_lstm_level.3} parent=5 // pred_fallthru
      _
    %p231 = scmp.lt.s32.totalorder %s14, 2
    // Predicated region
    $region25: #{corr_lstm_level.3} parent=5 // pred_check
      %p232 = pneg %p231
    $region26: #{corr_lstm_level.3} parent=5 // pred_check_branch
      %234 = sbr.rel (%p232) target = $region28
    $region27: #{corr_lstm_level.3} parent=5 // pred_region
      // Predicated region
      $region29: #{corr_lstm_level.3} parent=27 // pred_check
        %p235 = pneg %p34
      $region30: #{corr_lstm_level.3} parent=27 // pred_check_branch
        %237 = sbr.rel (%p235) target = $region32
      $region31: #{corr_lstm_level.3} parent=27 // pred_region
        %p238 = scmp.lt.s32.totalorder %s14, 1
        %s239 = scalar_select %p238, %s14, 1
        %s240 = smul.addr %s239, 2
        %s241 = smul.addr %s240, 8
        %s242 = scalar_lea.vmem %s0, %s241
      $region32: #{corr_lstm_level.3} parent=27 // pred_fallthru
        _
      // Predicated region
      $region33: #{corr_lstm_level.3} parent=27 // pred_check
        %p243 = pneg %p60
      $region34: #{corr_lstm_level.3} parent=27 // pred_check_branch
        %245 = sbr.rel (%p243) target = $region36
      $region35: #{corr_lstm_level.3} parent=27 // pred_region
        %p246 = scmp.lt.s32.totalorder %s14, 1
        %s247 = scalar_select %p246, %s14, 1
        %s248 = smul.addr %s247, 2
        %s249 = smul.addr %s248, 8
        %s250 = scalar_lea.vmem %s1, %s249
      $region36: #{corr_lstm_level.3} parent=27 // pred_fallthru
        _
      // Predicated region
      $region37: #{corr_lstm_level.3} parent=27 // pred_check
        %p251 = pneg %p86
      $region38: #{corr_lstm_level.3} parent=27 // pred_check_branch
        %253 = sbr.rel (%p251) target = $region40
      $region39: #{corr_lstm_level.3} parent=27 // pred_region
        %p254 = scmp.lt.s32.totalorder %s14, 1
        %s255 = scalar_select %p254, %s14, 1
        %s256 = smul.addr %s255, 2
        %s257 = smul.addr %s256, 8
        %s258 = scalar_lea.vmem %s2, %s257
      $region40: #{corr_lstm_level.3} parent=27 // pred_fallthru
        _
    $region28: #{corr_lstm_level.3} parent=5 // pred_fallthru
      _
    %p259 = scmp.le.s32.totalorder 1, %s14
    %p260 = scmp.lt.s32.totalorder %s14, 3
    %p261 = pnand %p259, %p260
    %p262 = pneg %p261
    // Predicated region
    $region41: #{corr_lstm_level.3} parent=5 // pred_check
      _
    $region42: #{corr_lstm_level.3} parent=5 // pred_check_branch
      %264 = sbr.rel (%p261) target = $region44
    $region43: #{corr_lstm_level.3} parent=5 // pred_region
      %s265 = ssub.s32 %s14, 1
      %p266 = scmp.lt.s32.totalorder %s19, 1
      %s267 = scalar_select %p266, %s19, 1
      %s268 = smul.addr %s267, 2
      %s269 = smul.addr %s268, 8
      %s270 = scalar_lea.vmem %s0, %s269
      %p271 = pneg %p40
      %p272 = pneg %p37
      %p273 = scmp.lt.s32.totalorder %s19, 1
      %s274 = scalar_select %p273, %s19, 1
      %s275 = smul.addr %s274, 2
      %s276 = smul.addr %s275, 8
      %s277 = scalar_lea.vmem %s1, %s276
      %p278 = pneg %p66
      %p279 = pneg %p63
      %p280 = scmp.lt.s32.totalorder %s19, 1
      %s281 = scalar_select %p280, %s19, 1
      %s282 = smul.addr %s281, 2
      %s283 = smul.addr %s282, 8
      %s284 = scalar_lea.vmem %s2, %s283
      %p285 = pneg %p92
      %p286 = pneg %p89
      %p287 = pneg %p113
      %p288 = pneg %p110
      %p289 = pneg %p134
      %p290 = pneg %p131
      %p291 = pneg %p155
      %p292 = pneg %p152
      %p293 = pneg %p181
      %p294 = pneg %p178
      %p295 = scmp.lt.s32.totalorder %s19, 1
      %s296 = scalar_select %p295, %s19, 1
      %s297 = smul.addr %s296, 2
      %s298 = smul.addr %s297, 8
      %s299 = scalar_lea.vmem %s6, %s298
      %p300 = pneg %p207
      %p301 = pneg %p204
      %p302 = scmp.lt.s32.totalorder %s19, 1
      %s303 = scalar_select %p302, %s19, 1
      %s304 = smul.addr %s303, 2
      %s305 = smul.addr %s304, 8
      %s306 = scalar_lea.vmem %s7, %s305
      %p307 = scmp.lt.s32.totalorder %s19, 1
      %s308 = scalar_select %p307, %s19, 1
      %s309 = smul.addr %s308, 2
      %s310 = smul.addr %s309, 8
      %s311 = scalar_lea.vmem %s0, %s310
      %p312 = scmp.lt.s32.totalorder %s19, 1
      %s313 = scalar_select %p312, %s19, 1
      %s314 = smul.addr %s313, 2
      %s315 = smul.addr %s314, 8
      %s316 = scalar_lea.vmem %s1, %s315
      %p317 = scmp.lt.s32.totalorder %s19, 1
      %s318 = scalar_select %p317, %s19, 1
      %s319 = smul.addr %s318, 2
      %s320 = smul.addr %s319, 8
      %s321 = scalar_lea.vmem %s2, %s320
      %p322 = scmp.lt.s32.totalorder %s19, 1
      %s323 = scalar_select %p322, %s19, 1
      %s324 = smul.addr %s323, 2
      %s325 = smul.addr %s324, 8
      %s326 = scalar_lea.vmem %s6, %s325
      %p327 = scmp.lt.s32.totalorder %s19, 1
      %s328 = scalar_select %p327, %s19, 1
      %s329 = smul.addr %s328, 2
      %s330 = smul.addr %s329, 8
      %s331 = scalar_lea.vmem %s7, %s330
      %v332 = vld [vmem:[%s311] sm:$0xff]
      %v333 = vld [vmem:[%s311 + $0x8] sm:$0x1]
      %vm334 = vcmask 523264
      %335 = vst.msk [vmem:[#allocation2] sm:$0xff] %vm334, %v332
      %vm336 = vcmask 516096
      %337 = vst.msk [vmem:[#allocation2 + $0x8] sm:$0x1] %vm336, %v333
      %v338 = vld [vmem:[%s316] sm:$0xff]
      %v339 = vld [vmem:[%s316 + $0x8] sm:$0x1]
      %340 = vst.msk [vmem:[#allocation2 + $0x9] sm:$0xff] %vm334, %v338
      %341 = vst.msk [vmem:[#allocation2 + $0x11] sm:$0x1] %vm336, %v339
      %v342 = vld [vmem:[#allocation2] sm:$0xff]
      %v343 = vld [vmem:[#allocation2 + $0x8] sm:$0xff]
      %v344 = vld [vmem:[#allocation2 + $0x10] sm:$0x3]
      %345 = vst.msk [vmem:[#allocation3] sm:$0xff] %vm334, 0.0
      %346 = vst.msk [vmem:[#allocation3 + $0x8] sm:$0xff] %vm334, 0.0
      %347 = vst.msk [vmem:[#allocation3 + $0x10] sm:$0xff] %vm334, 0.0
      %348 = vst.msk [vmem:[#allocation3 + $0x18] sm:$0xff] %vm334, 0.0
      %349 = vst.msk [vmem:[#allocation3 + $0x20] sm:$0xff] %vm334, 0.0
      %350 = vst.msk [vmem:[#allocation3 + $0x28] sm:$0xff] %vm334, 0.0
      %351 = vst.msk [vmem:[#allocation3 + $0x30] sm:$0xff] %vm334, 0.0
      %352 = vst.msk [vmem:[#allocation3 + $0x38] sm:$0xff] %vm334, 0.0
      %353 = vst.msk [vmem:[#allocation3 + $0x40] sm:$0xff] %vm334, 0.0
      %354 = vst.msk [vmem:[#allocation3 + $0x48] sm:$0xff] %vm334, 0.0
      %355 = vst.msk [vmem:[#allocation3 + $0x50] sm:$0xff] %vm334, 0.0
      %356 = vst.msk [vmem:[#allocation3 + $0x58] sm:$0xff] %vm334, 0.0
      %357 = vst.msk [vmem:[#allocation3 + $0x60] sm:$0xff] %vm334, 0.0
      %358 = vst.msk [vmem:[#allocation3 + $0x68] sm:$0xff] %vm334, 0.0
      %359 = vst.msk [vmem:[#allocation3 + $0x70] sm:$0xff] %vm334, 0.0
      %360 = vst.msk [vmem:[#allocation3 + $0x78] sm:$0xff] %vm334, 0.0
      %361 = vst.msk [vmem:[#allocation3 + $0x80] sm:$0xff] %vm334, 0.0
      %362 = vst.msk [vmem:[#allocation3 + $0x88] sm:$0xff] %vm334, 0.0
      %363 = vst.msk [vmem:[#allocation3 + $0x90] sm:$0xff] %vm334, 0.0
      %364 = vst.msk [vmem:[#allocation3 + $0x98] sm:$0xff] %vm334, 0.0
      %vm365 = vcmask 517120
      %366 = vst.msk [vmem:[#allocation3 + $0xa0] sm:$0x3] %vm365, 0.0
      %v367 = vld [vmem:[%s5] sm:$0x1]
      %v368 = vperm.slane %v367, 0
      %370 = vrot.lane.b32.xlu0 %v368, 119
      %v371 = vpop.permute.xlu0 %370
      %v373 = vmul.f32 %v342, %v371
      %v374 = vmul.f32 %v343, %v371
      %v375 = vmul.f32 %v344, %v371
      %379 = vrot.lane.b32.xlu0 %v373, 9
      %v380 = vpop.permute.xlu0 %379
      %381 = vrot.lane.b32.xlu0 %v374, 9
      %v382 = vpop.permute.xlu0 %381
      %383 = vrot.lane.b32.xlu0 %v375, 9
      %v384 = vpop.permute.xlu0 %383
      %vm388 = vcmask 523336
      %389 = vst.msk [vmem:[#allocation3] sm:$0xff] %vm388, %v380
      %390 = vst.msk [vmem:[#allocation3 + $0x8] sm:$0xff] %vm388, %v382
      %vm391 = vcmask 517192
      %392 = vst.msk [vmem:[#allocation3 + $0x10] sm:$0x3] %vm391, %v384
      %v393 = vld [vmem:[%s5 + $0x1] sm:$0x1]
      %v394 = vperm.slane %v393, 0
      %396 = vrot.lane.b32.xlu0 %v394, 120
      %v397 = vpop.permute.xlu0 %396
      %v399 = vmul.f32 %v342, %v397
      %v400 = vmul.f32 %v343, %v397
      %v401 = vmul.f32 %v344, %v397
      %405 = vrot.lane.b32.xlu0 %v399, 8
      %v406 = vpop.permute.xlu0 %405
      %407 = vrot.lane.b32.xlu0 %v400, 8
      %v408 = vpop.permute.xlu0 %407
      %409 = vrot.lane.b32.xlu0 %v401, 8
      %v410 = vpop.permute.xlu0 %409
      %vm414 = vcmask 523328
      %415 = vst.msk [vmem:[#allocation3 + $0x12] sm:$0xff] %vm414, %v406
      %416 = vst.msk [vmem:[#allocation3 + $0x1a] sm:$0xff] %vm414, %v408
      %vm417 = vcmask 517184
      %418 = vst.msk [vmem:[#allocation3 + $0x22] sm:$0x3] %vm417, %v410
      %v419 = vld [vmem:[%s5 + $0x2] sm:$0x1]
      %v420 = vperm.slane %v419, 0
      %422 = vrot.lane.b32.xlu0 %v420, 121
      %v423 = vpop.permute.xlu0 %422
      %v425 = vmul.f32 %v342, %v423
      %v426 = vmul.f32 %v343, %v423
      %v427 = vmul.f32 %v344, %v423
      %431 = vrot.lane.b32.xlu0 %v425, 7
      %v432 = vpop.permute.xlu0 %431
      %433 = vrot.lane.b32.xlu0 %v426, 7
      %v434 = vpop.permute.xlu0 %433
      %435 = vrot.lane.b32.xlu0 %v427, 7
      %v436 = vpop.permute.xlu0 %435
      %vm440 = vcmask 523320
      %441 = vst.msk [vmem:[#allocation3 + $0x24] sm:$0xff] %vm440, %v432
      %442 = vst.msk [vmem:[#allocation3 + $0x2c] sm:$0xff] %vm440, %v434
      %vm443 = vcmask 517176
      %444 = vst.msk [vmem:[#allocation3 + $0x34] sm:$0x3] %vm443, %v436
      %v445 = vld [vmem:[%s5 + $0x3] sm:$0x1]
      %v446 = vperm.slane %v445, 0
      %448 = vrot.lane.b32.xlu0 %v446, 127
      %v449 = vpop.permute.xlu0 %448
      %v451 = vmul.f32 %v342, %v449
      %v452 = vmul.f32 %v343, %v449
      %v453 = vmul.f32 %v344, %v449
      %457 = vrot.lane.b32.xlu0 %v451, 1
      %v458 = vpop.permute.xlu0 %457
      %459 = vrot.lane.b32.xlu0 %v452, 1
      %v460 = vpop.permute.xlu0 %459
      %461 = vrot.lane.b32.xlu0 %v453, 1
      %v462 = vpop.permute.xlu0 %461
      %vm466 = vcmask 523272
      %467 = vst.msk [vmem:[#allocation3 + $0x36] sm:$0xff] %vm466, %v458
      %468 = vst.msk [vmem:[#allocation3 + $0x3e] sm:$0xff] %vm466, %v460
      %vm469 = vcmask 517128
      %470 = vst.msk [vmem:[#allocation3 + $0x46] sm:$0x3] %vm469, %v462
      %v471 = vld [vmem:[%s5 + $0x4] sm:$0x1]
      %v472 = vperm.slane %v471, 0
      %v473 = vmul.f32 %v342, %v472
      %v474 = vmul.f32 %v343, %v472
      %v475 = vmul.f32 %v344, %v472
      %476 = vst.msk [vmem:[#allocation3 + $0x48] sm:$0xff] %vm334, %v473
      %477 = vst.msk [vmem:[#allocation3 + $0x50] sm:$0xff] %vm334, %v474
      %478 = vst.msk [vmem:[#allocation3 + $0x58] sm:$0x3] %vm365, %v475
      %v479 = vld [vmem:[%s5 + $0x5] sm:$0x1]
      %v480 = vperm.slane %v479, 0
      %482 = vrot.lane.b32.xlu0 %v480, 1
      %v483 = vpop.permute.xlu0 %482
      %v485 = vmul.f32 %v342, %v483
      %v486 = vmul.f32 %v343, %v483
      %v487 = vmul.f32 %v344, %v483
      %491 = vrot.lane.b32.xlu0 %v485, 127
      %v492 = vpop.permute.xlu0 %491
      %493 = vrot.lane.b32.xlu0 %v486, 127
      %v494 = vpop.permute.xlu0 %493
      %495 = vrot.lane.b32.xlu0 %v487, 127
      %v496 = vpop.permute.xlu0 %495
      %vm500 = vcmask 515072
      %501 = vst.msk [vmem:[#allocation3 + $0x5a] sm:$0xff] %vm500, %v492
      %502 = vst.msk [vmem:[#allocation3 + $0x62] sm:$0xff] %vm500, %v494
      %vm503 = vcmask 508928
      %504 = vst.msk [vmem:[#allocation3 + $0x6a] sm:$0x3] %vm503, %v496
      %v505 = vld [vmem:[%s5 + $0x6] sm:$0x1]
      %v506 = vperm.slane %v505, 0
      %508 = vrot.lane.b32.xlu0 %v506, 7
      %v509 = vpop.permute.xlu0 %508
      %v511 = vmul.f32 %v342, %v509
      %v512 = vmul.f32 %v343, %v509
      %v513 = vmul.f32 %v344, %v509
      %517 = vrot.lane.b32.xlu0 %v511, 121
      %v518 = vpop.permute.xlu0 %517
      %519 = vrot.lane.b32.xlu0 %v512, 121
      %v520 = vpop.permute.xlu0 %519
      %521 = vrot.lane.b32.xlu0 %v513, 121
      %v522 = vpop.permute.xlu0 %521
      %vm526 = vcmask 465920
      %527 = vst.msk [vmem:[#allocation3 + $0x6c] sm:$0xff] %vm526, %v518
      %528 = vst.msk [vmem:[#allocation3 + $0x74] sm:$0xff] %vm526, %v520
      %vm529 = vcmask 459776
      %530 = vst.msk [vmem:[#allocation3 + $0x7c] sm:$0x3] %vm529, %v522
      %v531 = vld [vmem:[%s5 + $0x7] sm:$0x1]
      %v532 = vperm.slane %v531, 0
      %534 = vrot.lane.b32.xlu0 %v532, 8
      %v535 = vpop.permute.xlu0 %534
      %v537 = vmul.f32 %v342, %v535
      %v538 = vmul.f32 %v343, %v535
      %v539 = vmul.f32 %v344, %v535
      %543 = vrot.lane.b32.xlu0 %v537, 120
      %v544 = vpop.permute.xlu0 %543
      %545 = vrot.lane.b32.xlu0 %v538, 120
      %v546 = vpop.permute.xlu0 %545
      %547 = vrot.lane.b32.xlu0 %v539, 120
      %v548 = vpop.permute.xlu0 %547
      %vm552 = vcmask 457728
      %553 = vst.msk [vmem:[#allocation3 + $0x7e] sm:$0xff] %vm552, %v544
      %554 = vst.msk [vmem:[#allocation3 + $0x86] sm:$0xff] %vm552, %v546
      %vm555 = vcmask 451584
      %556 = vst.msk [vmem:[#allocation3 + $0x8e] sm:$0x3] %vm555, %v548
      %v557 = vld [vmem:[%s5 + $0x8] sm:$0x1]
      %v558 = vperm.slane %v557, 0
      %560 = vrot.lane.b32.xlu0 %v558, 9
      %v561 = vpop.permute.xlu0 %560
      %v563 = vmul.f32 %v342, %v561
      %v564 = vmul.f32 %v343, %v561
      %v565 = vmul.f32 %v344, %v561
      %569 = vrot.lane.b32.xlu0 %v563, 119
      %v570 = vpop.permute.xlu0 %569
      %571 = vrot.lane.b32.xlu0 %v564, 119
      %v572 = vpop.permute.xlu0 %571
      %573 = vrot.lane.b32.xlu0 %v565, 119
      %v574 = vpop.permute.xlu0 %573
      %vm578 = vcmask 449536
      %579 = vst.msk [vmem:[#allocation3 + $0x90] sm:$0xff] %vm578, %v570
      %580 = vst.msk [vmem:[#allocation3 + $0x98] sm:$0xff] %vm578, %v572
      %vm581 = vcmask 443392
      %582 = vst.msk [vmem:[#allocation3 + $0xa0] sm:$0x3] %vm581, %v574
      %v583 = vld [vmem:[%s3] sm:$0xff]
      %v584 = vld [vmem:[%s3 + $0x8] sm:$0xff]
      %v585 = vld [vmem:[%s3 + $0x10] sm:$0xff]
      %v586 = vld [vmem:[%s3 + $0x18] sm:$0xff]
      %v587 = vld [vmem:[%s3 + $0x20] sm:$0xff]
      %v588 = vld [vmem:[%s3 + $0x28] sm:$0xff]
      %v589 = vld [vmem:[%s3 + $0x30] sm:$0xff]
      %v590 = vld [vmem:[%s3 + $0x38] sm:$0xff]
      %v591 = vld [vmem:[%s3 + $0x40] sm:$0xf]
      %v592 = vld [vmem:[%s3 + $0x48] sm:$0xf]
      %v593 = vld [vmem:[#allocation3] sm:$0xff]
      %v594 = vld [vmem:[#allocation3 + $0x8] sm:$0xff]
      %v595 = vld [vmem:[#allocation3 + $0x10] sm:$0xff]
      %v596 = vld [vmem:[#allocation3 + $0x18] sm:$0xff]
      %v597 = vld [vmem:[#allocation3 + $0x20] sm:$0xff]
      %v598 = vld [vmem:[#allocation3 + $0x28] sm:$0xff]
      %v599 = vld [vmem:[#allocation3 + $0x30] sm:$0xff]
      %v600 = vld [vmem:[#allocation3 + $0x38] sm:$0xff]
      %v601 = vld [vmem:[#allocation3 + $0x40] sm:$0xff]
      %v602 = vld [vmem:[#allocation3 + $0x48] sm:$0xff]
      %v603 = vld [vmem:[#allocation3 + $0x50] sm:$0xff]
      %v604 = vld [vmem:[#allocation3 + $0x58] sm:$0xff]
      %v605 = vld [vmem:[#allocation3 + $0x60] sm:$0xff]
      %v606 = vld [vmem:[#allocation3 + $0x68] sm:$0xff]
      %v607 = vld [vmem:[#allocation3 + $0x70] sm:$0xff]
      %v608 = vld [vmem:[#allocation3 + $0x78] sm:$0xff]
      %v609 = vld [vmem:[#allocation3 + $0x80] sm:$0xff]
      %v610 = vld [vmem:[#allocation3 + $0x88] sm:$0xff]
      %v611 = vld [vmem:[#allocation3 + $0x90] sm:$0xff]
      %v612 = vld [vmem:[#allocation3 + $0x98] sm:$0xff]
      %v613 = vld [vmem:[#allocation3 + $0xa0] sm:$0x3]
      %v614 = vld [vmem:[%s4] sm:$0xff]
      %v615 = vld [vmem:[%s4 + $0x8] sm:$0xff]
      %v616 = vld [vmem:[%s4 + $0x10] sm:$0xff]
      %v617 = vld [vmem:[%s4 + $0x18] sm:$0xff]
      %v618 = vld [vmem:[%s4 + $0x20] sm:$0xf]
      %620 = vset.pattern.permute.xlu0 0
      %621 = vperm.xlu0 %620, %v614
      %v622 = vpop.permute.xlu0 %621
      %625 = vset.pattern.permute.xlu0 0
      %626 = vperm.xlu0 %625, %v615
      %v627 = vpop.permute.xlu0 %626
      %630 = vset.pattern.permute.xlu0 0
      %631 = vperm.xlu0 %630, %v616
      %v632 = vpop.permute.xlu0 %631
      %635 = vset.pattern.permute.xlu0 0
      %636 = vperm.xlu0 %635, %v617
      %v637 = vpop.permute.xlu0 %636
      %640 = vset.pattern.permute.xlu0 0
      %641 = vperm.xlu0 %640, %v618
      %v642 = vpop.permute.xlu0 %641
      %vm644 = vcmask 277504
      %v646 = vsel %vm644, %v584, 0
      %v649 = vsel %vm644, %v586, 0
      %v652 = vsel %vm644, %v588, 0
      %v655 = vsel %vm644, %v590, 0
      %v658 = vsel %vm644, %v592, 0
      %vm660 = vcmask 1041408
      %v662 = vsel %vm660, %v613, 0
      %664 = vmatpush.msra.mxu0 %v608
      %665 = vmatpush.msra.mxu0 %v607
      %666 = vmatpush.msra.mxu0 %v606
      %667 = vmatpush.msra.mxu0 %v605
      %668 = vmatpush.msra.mxu0 %v604
      %669 = vmatpush.msra.mxu0 %v603
      %670 = vmatpush.msra.mxu0 %v602
      %671 = vmatpush.msra.mxu0 %v601
      %672 = vmatpush.msra.mxu0 %v600
      %673 = vmatpush.msra.mxu0 %v599
      %674 = vmatpush.msra.mxu0 %v598
      %675 = vmatpush.msra.mxu0 %v597
      %676 = vmatpush.msra.mxu0 %v596
      %677 = vmatpush.msra.mxu0 %v595
      %678 = vmatpush.msra.mxu0 %v594
      %679 = vmatpush.msra.mxu0 %v593
      %680 = vmatmul.f32.gmra.mxu0 %v583
      %v681 = vpop.f32.mrf.mxu0
      %v682 = vadd.f32 %v622, %v681
      %683 = vmatmul.f32.gmra.mxu0 %v585
      %v684 = vpop.f32.mrf.mxu0
      %v685 = vadd.f32 %v627, %v684
      %686 = vmatmul.f32.gmra.mxu0 %v587
      %v687 = vpop.f32.mrf.mxu0
      %v688 = vadd.f32 %v632, %v687
      %689 = vmatmul.f32.gmra.mxu0 %v589
      %v690 = vpop.f32.mrf.mxu0
      %v691 = vadd.f32 %v637, %v690
      %692 = vmatmul.f32.gmra.mxu0 %v591
      %v693 = vpop.f32.mrf.mxu0
      %v694 = vadd.f32 %v642, %v693
      %695 = vdwg.mxu0
      %696 = vmatpush.msra.mxu0 0.0
      %697 = vmatpush.msra.mxu0 0.0
      %698 = vmatpush.msra.mxu0 0.0
      %699 = vmatpush.msra.mxu0 0.0
      %700 = vmatpush.msra.mxu0 0.0
      %701 = vmatpush.msra.mxu0 0.0
      %702 = vmatpush.msra.mxu0 0.0
      %703 = vmatpush.msra.mxu0 0.0
      %704 = vmatpush.msra.mxu0 0.0
      %705 = vmatpush.msra.mxu0 0.0
      %706 = vmatpush.msra.mxu0 0.0
      %707 = vmatpush.msra.mxu0 %v662
      %708 = vmatpush.msra.mxu0 %v612
      %709 = vmatpush.msra.mxu0 %v611
      %710 = vmatpush.msra.mxu0 %v610
      %711 = vmatpush.msra.mxu0 %v609
      %712 = vmatmul.f32.gmra.mxu0 %v646
      %v713 = vpop.f32.mrf.mxu0
      %v714 = vadd.f32 %v682, %v713
      %715 = vmatmul.f32.gmra.mxu0 %v649
      %v716 = vpop.f32.mrf.mxu0
      %v717 = vadd.f32 %v685, %v716
      %718 = vmatmul.f32.gmra.mxu0 %v652
      %v719 = vpop.f32.mrf.mxu0
      %v720 = vadd.f32 %v688, %v719
      %721 = vmatmul.f32.gmra.mxu0 %v655
      %v722 = vpop.f32.mrf.mxu0
      %v723 = vadd.f32 %v691, %v722
      %724 = vmatmul.f32.gmra.mxu0 %v658
      %v725 = vpop.f32.mrf.mxu0
      %v726 = vadd.f32 %v694, %v725
      %727 = vdwg.mxu0
      %v728 = vsub.f32 0.0, %v714
      %v729 = vsub.f32 0.0, %v717
      %v730 = vmul.f32 %v728, 1.442695
      %v731 = vpow.pop %v730
      %v732 = vmul.f32 %v729, 1.442695
      %v733 = vpow.pop %v732
      %v734 = vadd.f32 %v731, 1.0
      %v735 = vadd.f32 %v733, 1.0
      %v736 = vrcp.pop %v734
      %v737 = vmul.f32 %v734, %v736
      %v738 = vsub.f32 1.0, %v737
      %v739 = vmul.f32 %v736, %v738
      %v740 = vadd.f32 %v736, %v739
      %vm741 = vweird.f32 %v734
      %vm742 = vweird.f32 %v736
      %vm743 = vmor %vm741, %vm742
      %v744 = vsel %vm743, %v736, %v740
      %v745 = vand.u32 2147483647, %v734
      %vm746 = vcmp.eq.f32.partialorder %v745, 8.507059e+37
      %v747 = vand.u32 %v734, 2147483648
      %v748 = vor.u32 1.1754944e-38, %v747
      %v749 = vsel %vm746, %v748, %v744
      %v750 = vmul.f32 1.0, %v749
      %v751 = vrcp.pop %v735
      %v752 = vmul.f32 %v735, %v751
      %v753 = vsub.f32 1.0, %v752
      %v754 = vmul.f32 %v751, %v753
      %v755 = vadd.f32 %v751, %v754
      %vm756 = vweird.f32 %v735
      %vm757 = vweird.f32 %v751
      %vm758 = vmor %vm756, %vm757
      %v759 = vsel %vm758, %v751, %v755
      %v760 = vand.u32 2147483647, %v735
      %vm761 = vcmp.eq.f32.partialorder %v760, 8.507059e+37
      %v762 = vand.u32 %v735, 2147483648
      %v763 = vor.u32 1.1754944e-38, %v762
      %v764 = vsel %vm761, %v763, %v759
      %v765 = vmul.f32 1.0, %v764
      %v766 = vsub.f32 0.0, %v720
      %v767 = vmul.f32 %v766, 1.442695
      %v768 = vpow.pop %v767
      %v769 = vadd.f32 %v768, 1.0
      %v770 = vrcp.pop %v769
      %v771 = vmul.f32 %v769, %v770
      %v772 = vsub.f32 1.0, %v771
      %v773 = vmul.f32 %v770, %v772
      %v774 = vadd.f32 %v770, %v773
      %vm775 = vweird.f32 %v769
      %vm776 = vweird.f32 %v770
      %vm777 = vmor %vm775, %vm776
      %v778 = vsel %vm777, %v770, %v774
      %v779 = vand.u32 2147483647, %v769
      %vm780 = vcmp.eq.f32.partialorder %v779, 8.507059e+37
      %v781 = vand.u32 %v769, 2147483648
      %v782 = vor.u32 1.1754944e-38, %v781
      %v783 = vsel %vm780, %v782, %v778
      %v784 = vmul.f32 1.0, %v783
      %v785 = vsub.f32 0.0, %v723
      %v786 = vmul.f32 %v785, 1.442695
      %v787 = vpow.pop %v786
      %v788 = vadd.f32 %v787, 1.0
      %v789 = vrcp.pop %v788
      %v790 = vmul.f32 %v788, %v789
      %v791 = vsub.f32 1.0, %v790
      %v792 = vmul.f32 %v789, %v791
      %v793 = vadd.f32 %v789, %v792
      %vm794 = vweird.f32 %v788
      %vm795 = vweird.f32 %v789
      %vm796 = vmor %vm794, %vm795
      %v797 = vsel %vm796, %v789, %v793
      %v798 = vand.u32 2147483647, %v788
      %vm799 = vcmp.eq.f32.partialorder %v798, 8.507059e+37
      %v800 = vand.u32 %v788, 2147483648
      %v801 = vor.u32 1.1754944e-38, %v800
      %v802 = vsel %vm799, %v801, %v797
      %v803 = vmul.f32 1.0, %v802
      %v804 = vtanh.pop %v723
      %v805 = vtanh.pop %v726
      %v806 = vld [vmem:[%s321] sm:$0xff]
      %v807 = vld [vmem:[%s321 + $0x8] sm:$0x1]
      %vm810 = vcmask 1040384
      %v811 = vrot.slane %v806, 7
      %v812 = vrot.slane %v807, 7
      %v813 = vsel %vm810, %v811, %v812
      %v816 = vmul.f32 %v765, %v811
      %v817 = vmul.f32 %v784, %v813
      %vm820 = vcmask 1044480
      %v821 = vrot.slane %v804, 3
      %v822 = vrot.slane %v805, 3
      %v823 = vsel %vm820, %v821, %v822
      %v826 = vmul.f32 %v750, %v823
      %v827 = vmul.f32 %v765, %v822
      %v830 = vrot.slane %v826, 7
      %v831 = vrot.slane %v827, 7
      %v832 = vsel %vm810, %v830, %v831
      %v835 = vadd.f32 %v816, %v830
      %v836 = vadd.f32 %v817, %v832
      %vm837 = vcmask 523265
      %838 = vst.msk [vmem:[%s331 - $0x1] sm:$0xfe] %vm837, %v835
      %839 = vst.msk [vmem:[%s331 + $0x7] sm:$0x3] %vm365, %v836
      %v840 = vtanh.pop %v835
      %v841 = vtanh.pop %v836
      %v844 = vrot.slane %v840, 7
      %v845 = vrot.slane %v841, 7
      %v846 = vsel %vm810, %v844, %v845
      %v849 = vmul.f32 %v784, %v844
      %v850 = vmul.f32 %v803, %v846
      %vm851 = vcmask 523266
      %852 = vst.msk [vmem:[%s326 - $0x2] sm:$0xfc] %vm851, %v849
      %vm853 = vcmask 518144
      %854 = vst.msk [vmem:[%s326 + $0x6] sm:$0x7] %vm853, %v850
      %p855 = scmp.lt.s32.totalorder %s19, 1
      %s856 = scalar_select %p855, %s19, 1
      %s857 = smul.addr %s856, 2
      %s858 = smul.addr %s857, 8
      %s859 = scalar_lea.vmem %s6, %s858
      %p860 = scmp.lt.s32.totalorder %s19, 1
      %s861 = scalar_select %p860, %s19, 1
      %s862 = smul.addr %s861, 2
      %s863 = smul.addr %s862, 8
      %s864 = scalar_lea.vmem %s7, %s863
      // Predicated region
      $region45: #{corr_lstm_level.3} parent=43 // pred_check
        %p865 = pneg %p178
      $region46: #{corr_lstm_level.3} parent=43 // pred_check_branch
        %867 = sbr.rel (%p865) target = $region48
      $region47: #{corr_lstm_level.3} parent=43 // pred_region
        _
      $region48: #{corr_lstm_level.3} parent=43 // pred_fallthru
        _
      // Predicated region
      $region49: #{corr_lstm_level.3} parent=43 // pred_check
        %p868 = pneg %p204
      $region50: #{corr_lstm_level.3} parent=43 // pred_check_branch
        %870 = sbr.rel (%p868) target = $region52
      $region51: #{corr_lstm_level.3} parent=43 // pred_region
        _
      $region52: #{corr_lstm_level.3} parent=43 // pred_fallthru
        _
    $region44: #{corr_lstm_level.3} parent=5 // pred_fallthru
      _
    %p871 = scmp.le.s32.totalorder 2, %s14
    // Predicated region
    $region53: #{corr_lstm_level.3} parent=5 // pred_check
      %p872 = pneg %p871
    $region54: #{corr_lstm_level.3} parent=5 // pred_check_branch
      %874 = sbr.rel (%p872) target = $region56
    $region55: #{corr_lstm_level.3} parent=5 // pred_region
      %s875 = ssub.s32 %s14, 2
      // Predicated region
      $region57: #{corr_lstm_level.3} parent=55 // pred_check
        %p876 = pneg %p184
      $region58: #{corr_lstm_level.3} parent=55 // pred_check_branch
        %878 = sbr.rel (%p876) target = $region60
      $region59: #{corr_lstm_level.3} parent=55 // pred_region
        %p879 = scmp.lt.s32.totalorder %s20, 1
        %s880 = scalar_select %p879, %s20, 1
        %s881 = smul.addr %s880, 2
        %s882 = smul.addr %s881, 8
        %s883 = scalar_lea.vmem %s6, %s882
      $region60: #{corr_lstm_level.3} parent=55 // pred_fallthru
        _
      // Predicated region
      $region61: #{corr_lstm_level.3} parent=55 // pred_check
        %p884 = pneg %p210
      $region62: #{corr_lstm_level.3} parent=55 // pred_check_branch
        %886 = sbr.rel (%p884) target = $region64
      $region63: #{corr_lstm_level.3} parent=55 // pred_region
        %p887 = scmp.lt.s32.totalorder %s20, 1
        %s888 = scalar_select %p887, %s20, 1
        %s889 = smul.addr %s888, 2
        %s890 = smul.addr %s889, 8
        %s891 = scalar_lea.vmem %s7, %s890
      $region64: #{corr_lstm_level.3} parent=55 // pred_fallthru
        _
    $region56: #{corr_lstm_level.3} parent=5 // pred_fallthru
      _
  $region6: #{corr_lstm_level.3} parent=0 // loop_footer
    %s18 = sadd.s32 1, %s14
  $region7: #{corr_lstm_level.3} parent=0 // loop_footer_branch
    %13 = sbr.rel target = $region3
  $region8: #{corr_lstm_level.3} parent=0 // loop_exit
    _

</llo_original>
